<compile_context>
chip_gen: v6e
topology: v6e:2x2x1
jax: 0.10.0
libtpu: 0.0.40
codegen_flags: <defaults>
</compile_context>

<pallas_src>
import functools

import jax
import jax.numpy as jnp
from jax.experimental import pallas as pl
from jax.experimental.pallas import tpu as pltpu


def _rnn_chunk_kernel(h0_ref, x_ref,
                      wx_ref, whrec_ref, brec_ref,
                      w1h_ref, b1_ref,
                      w2_ref, b2_ref,
                      w3_ref, b3_ref,
                      w4_ref, b4_ref,
                      y_ref, hfin_ref,
                      h_carry, hseq):
    """One grid step == one chunk of TC time steps (h carried in VMEM scratch)."""
    c = pl.program_id(0)
    bf16, f32 = jnp.bfloat16, jnp.float32

    MB, I = x_ref.shape                 # MB = TC * B (time folded into M)
    B, Rp = h_carry.shape
    TC = MB // B
    H1p = w1h_ref.shape[1]

    @pl.when(c == 0)
    def _():
        h_carry[...] = h0_ref[...]

    # ---- Phase A: time-parallel x projections, one matmul with M = TC*B ----
    x = x_ref[...]                                               # bf16, streamed
    xz = jnp.dot(x, wx_ref[...], preferred_element_type=f32)     # (TC*B, H1p+Rp)
    xa1 = xz[:, :H1p]                                            # lane-0 aligned
    xrec = xz[:, H1p:] + brec_ref[...]                           # bias hoisted out of the loop

    # ---- Phase B: serial recurrence (the only truly sequential work) -------
    whrec = whrec_ref[...]
    h = h_carry[...]                                             # f32 carry
    for t in range(TC):                                          # static unroll
        r = t * B
        hseq[r:r + B, :] = h                                     # h_{t-1} for the MLP
        h = (jnp.dot(h.astype(bf16), whrec, preferred_element_type=f32)
             + xrec[r:r + B, :])
    h_carry[...] = h
    hfin_ref[...] = h

    # ---- Phase C: time-parallel MLP over the whole chunk (M = TC*B) --------
    hs = hseq[...].astype(bf16)
    a1 = jnp.maximum(
        jnp.dot(hs, w1h_ref[...], preferred_element_type=f32) + xa1 + b1_ref[...],
        0.0)
    a2 = jnp.maximum(
        jnp.dot(a1.astype(bf16), w2_ref[...], preferred_element_type=f32)
        + b2_ref[...], 0.0)
    a3 = jnp.maximum(
        jnp.dot(a2.astype(bf16), w3_ref[...], preferred_element_type=f32)
        + b3_ref[...], 0.0)
    y_ref[...] = (jnp.dot(a3.astype(bf16), w4_ref[...],
                          preferred_element_type=f32) + b4_ref[...])


def _pad2(a, rows, cols):
    return jnp.pad(a, ((0, rows - a.shape[0]), (0, cols - a.shape[1])))


@functools.partial(jax.jit, static_argnames=("time_chunk",))
def rnn_forward_sequence(xs, h0, params, *, time_chunk=8):
    """Run the RNN over a whole sequence inside one fused Pallas kernel.

    xs: (T, B, I) inputs, h0: (B, R) initial recurrent state.
    Returns (ys, h_final): ys (T, B, O) per-step outputs, h_final (B, R).
    """
    T, B, I = xs.shape
    R = params["w_rec"].shape[1]
    H1 = params["w1"].shape[1]
    H2 = params["w2"].shape[1]
    H3 = params["w3"].shape[1]
    O = params["w4"].shape[1]

    # Pad every hidden/output width to a multiple of 128 lanes: full MXU tiles
    # on all generations and 128-aligned lane slices inside the kernel.
    Rp = 128 * pl.cdiv(R, 128)
    H1p = 128 * pl.cdiv(H1, 128)
    H2p = 128 * pl.cdiv(H2, 128)
    H3p = 128 * pl.cdiv(H3, 128)
    Op = 128 * pl.cdiv(O, 128)

    tc = min(time_chunk, T)
    assert T % tc == 0, "sequence length must be divisible by the time chunk"

    f32, bf16 = jnp.float32, jnp.bfloat16

    # Split the first-layer weights into x-rows vs h-rows (no concat needed in
    # the kernel).  MLP columns first so a1 starts at lane 0; the recurrent
    # columns land at the 128-aligned offset H1p.
    wx = jnp.concatenate(
        [_pad2(params["w1"][:I], I, H1p), _pad2(params["w_rec"][:I], I, Rp)],
        axis=1).astype(bf16)                                    # (I, H1p+Rp)
    whrec = _pad2(params["w_rec"][I:], Rp, Rp).astype(bf16)     # (Rp, Rp)
    brec = _pad2(params["b_rec"], 1, Rp).astype(f32)
    w1h = _pad2(params["w1"][I:], Rp, H1p).astype(bf16)
    b1 = _pad2(params["b1"], 1, H1p).astype(f32)
    w2 = _pad2(params["w2"], H1p, H2p).astype(bf16)
    b2 = _pad2(params["b2"], 1, H2p).astype(f32)
    w3 = _pad2(params["w3"], H2p, H3p).astype(bf16)
    b3 = _pad2(params["b3"], 1, H3p).astype(f32)
    w4 = _pad2(params["w4"], H3p, Op).astype(bf16)
    b4 = _pad2(params["b4"], 1, Op).astype(f32)

    # Stream x in bf16, time folded into the M (sublane) axis.
    xs_flat = xs.astype(bf16).reshape(T * B, I)
    h0p = jnp.pad(h0.astype(f32), ((0, 0), (0, Rp - R)))

    const2 = lambda c: (0, 0)

    flops = 2 * T * B * (I * (H1p + Rp) + Rp * Rp + Rp * H1p
                         + H1p * H2p + H2p * H3p + H3p * Op)
    bytes_accessed = (
        2 * (I * (H1p + Rp) + Rp * Rp + Rp * H1p + H1p * H2p + H2p * H3p + H3p * Op)
        + 4 * (Rp + H1p + H2p + H3p + Op)          # f32 biases (once)
        + 2 * T * B * I                            # bf16 x stream
        + 4 * T * B * Op                           # f32 y writeback
        + 4 * 2 * B * Rp)                          # h0 in + h_final out

    grid_spec = pltpu.PrefetchScalarGridSpec(
        num_scalar_prefetch=0,
        grid=(T // tc,),
        in_specs=[
            pl.BlockSpec((B, Rp), const2),                      # h0      (resident)
            pl.BlockSpec((tc * B, I), lambda c: (c, 0)),        # x chunk (streamed)
            pl.BlockSpec((I, H1p + Rp), const2),                # wx      (resident)
            pl.BlockSpec((Rp, Rp), const2),                     # w_rec_h
            pl.BlockSpec((1, Rp), const2),                      # b_rec
            pl.BlockSpec((Rp, H1p), const2),                    # w1_h
            pl.BlockSpec((1, H1p), const2),                     # b1
            pl.BlockSpec((H1p, H2p), const2),                   # w2
            pl.BlockSpec((1, H2p), const2),                     # b2
            pl.BlockSpec((H2p, H3p), const2),                   # w3
            pl.BlockSpec((1, H3p), const2),                     # b3
            pl.BlockSpec((H3p, Op), const2),                    # w4 (zero-padded)
            pl.BlockSpec((1, Op), const2),                      # b4 (zero-padded)
        ],
        out_specs=[
            pl.BlockSpec((tc * B, Op), lambda c: (c, 0)),       # y chunk (streamed)
            pl.BlockSpec((B, Rp), const2),                      # final h (resident)
        ],
        scratch_shapes=[
            pltpu.VMEM((B, Rp), f32),         # recurrent carry across chunks
            pltpu.VMEM((tc * B, Rp), f32),    # h_{t-1} sequence for the batched MLP
        ],
    )

    ys_flat, h_pad = pl.pallas_call(
        _rnn_chunk_kernel,
        out_shape=(jax.ShapeDtypeStruct((T * B, Op), f32),
                   jax.ShapeDtypeStruct((B, Rp), f32)),
        grid_spec=grid_spec,
        compiler_params=pltpu.CompilerParams(
            dimension_semantics=("arbitrary",)),    # time chunks are sequential
        cost_estimate=pl.CostEstimate(
            flops=flops, transcendentals=0, bytes_accessed=bytes_accessed),
    )(h0p, xs_flat, wx, whrec, brec, w1h, b1, w2, b2, w3, b3, w4, b4)

    ys = ys_flat.reshape(T, B, Op)[:, :, :O]
    h_final = h_pad[:, :R]
    return ys, h_final


def init_params(key, input_size, recurrent_size, output_size):
    """Deterministic PyTorch-style init; weights stored as (in, out) == W.T."""
    h1, h2, h3 = 200, 150, 50
    dims = [
        ("w_rec", "b_rec", input_size + recurrent_size, recurrent_size),
        ("w1", "b1", input_size + recurrent_size, h1),
        ("w2", "b2", h1, h2),
        ("w3", "b3", h2, h3),
        ("w4", "b4", h3, output_size),
    ]
    params = {}
    for wname, bname, fan_in, fan_out in dims:
        key, kw, kb = jax.random.split(key, 3)
        bound = 1.0 / jnp.sqrt(jnp.float32(fan_in))
        params[wname] = jax.random.uniform(
            kw, (fan_in, fan_out), jnp.float32, -bound, bound)
        params[bname] = jax.random.uniform(
            kb, (1, fan_out), jnp.float32, -bound, bound)
    return params


def reference_forward_sequence(xs, h0, params):
    """Pure-JAX reference mirroring the kernel math (bf16 operands, f32 accum)."""
    bf16, f32 = jnp.bfloat16, jnp.float32
    I = xs.shape[-1]

    def bdot(a, w):
        return jnp.dot(a.astype(bf16), w.astype(bf16), preferred_element_type=f32)

    def step(h, x):
        h_new = bdot(x, params["w_rec"][:I]) + bdot(h, params["w_rec"][I:]) + params["b_rec"]
        a = jnp.maximum(bdot(x, params["w1"][:I]) + bdot(h, params["w1"][I:]) + params["b1"], 0.0)
        a = jnp.maximum(bdot(a, params["w2"]) + params["b2"], 0.0)
        a = jnp.maximum(bdot(a, params["w3"]) + params["b3"], 0.0)
        y = bdot(a, params["w4"]) + params["b4"]
        return h_new, y

    h = h0.astype(f32)
    ys = []
    for t in range(xs.shape[0]):
        h, y = step(h, xs[t].astype(f32))
        ys.append(y)
    return jnp.stack(ys), h


if __name__ == "__main__":
    key = jax.random.PRNGKey(0)

    T = 8               # sequence length (all steps fused into one kernel call)
    batch = 8
    input_size = 16
    recurrent_size = 32
    output_size = 10

    kp, kx = jax.random.split(key)
    params = init_params(kp, input_size, recurrent_size, output_size)

    xs = jax.random.normal(kx, (T, batch, input_size), jnp.float32)
    h0 = jnp.zeros((batch, recurrent_size), jnp.float32)   # init_recurrent -> zeros

    ys, h_final = rnn_forward_sequence(xs, h0, params, time_chunk=T)
    jax.block_until_ready((ys, h_final))

    rys, rh = reference_forward_sequence(xs, h0, params)
    assert ys.shape == (T, batch, output_size)
    assert h_final.shape == (batch, recurrent_size)
    assert jnp.allclose(ys, rys, atol=2e-3, rtol=2e-3), \
        float(jnp.max(jnp.abs(ys - rys)))
    assert jnp.allclose(h_final, rh, atol=2e-3, rtol=2e-3), \
        float(jnp.max(jnp.abs(h_final - rh)))

    print("KERNEL_OK")
</pallas_src>

<mosaic_0001>
module attributes {stable_mosaic.version = 11 : i64} {
  func.func @_rnn_chunk_kernel(%arg0: i32, %arg1: memref<8x128xf32, #tpu.memory_space<vmem>>, %arg2: memref<64x16xbf16, #tpu.memory_space<vmem>>, %arg3: memref<16x384xbf16, #tpu.memory_space<vmem>>, %arg4: memref<128x128xbf16, #tpu.memory_space<vmem>>, %arg5: memref<1x128xf32, #tpu.memory_space<vmem>>, %arg6: memref<128x256xbf16, #tpu.memory_space<vmem>>, %arg7: memref<1x256xf32, #tpu.memory_space<vmem>>, %arg8: memref<256x256xbf16, #tpu.memory_space<vmem>>, %arg9: memref<1x256xf32, #tpu.memory_space<vmem>>, %arg10: memref<256x128xbf16, #tpu.memory_space<vmem>>, %arg11: memref<1x128xf32, #tpu.memory_space<vmem>>, %arg12: memref<128x128xbf16, #tpu.memory_space<vmem>>, %arg13: memref<1x128xf32, #tpu.memory_space<vmem>>, %arg14: memref<64x128xf32, #tpu.memory_space<vmem>>, %arg15: memref<8x128xf32, #tpu.memory_space<vmem>>, %arg16: memref<8x128xf32, #tpu.memory_space<vmem>>, %arg17: memref<64x128xf32, #tpu.memory_space<vmem>>) attributes {dimension_semantics = [#tpu.dimension_semantics<arbitrary>], iteration_bounds = array<i64: 1>, scalar_prefetch = 0 : i64, scratch_operands = 2 : i64, tpu.core_type = #tpu.core_type<tc>, window_params = [{pipeline_mode = #tpu.pipeline_mode<synchronous>, transform_indices = @transform_0, window_bounds = array<i64: 8, 128>}, {transform_indices = @transform_1, window_bounds = array<i64: 64, 16>}, {pipeline_mode = #tpu.pipeline_mode<synchronous>, transform_indices = @transform_2, window_bounds = array<i64: 16, 384>}, {pipeline_mode = #tpu.pipeline_mode<synchronous>, transform_indices = @transform_3, window_bounds = array<i64: 128, 128>}, {pipeline_mode = #tpu.pipeline_mode<synchronous>, transform_indices = @transform_4, window_bounds = array<i64: 1, 128>}, {pipeline_mode = #tpu.pipeline_mode<synchronous>, transform_indices = @transform_5, window_bounds = array<i64: 128, 256>}, {pipeline_mode = #tpu.pipeline_mode<synchronous>, transform_indices = @transform_6, window_bounds = array<i64: 1, 256>}, {pipeline_mode = #tpu.pipeline_mode<synchronous>, transform_indices = @transform_7, window_bounds = array<i64: 256, 256>}, {pipeline_mode = #tpu.pipeline_mode<synchronous>, transform_indices = @transform_8, window_bounds = array<i64: 1, 256>}, {pipeline_mode = #tpu.pipeline_mode<synchronous>, transform_indices = @transform_9, window_bounds = array<i64: 256, 128>}, {pipeline_mode = #tpu.pipeline_mode<synchronous>, transform_indices = @transform_10, window_bounds = array<i64: 1, 128>}, {pipeline_mode = #tpu.pipeline_mode<synchronous>, transform_indices = @transform_11, window_bounds = array<i64: 128, 128>}, {pipeline_mode = #tpu.pipeline_mode<synchronous>, transform_indices = @transform_12, window_bounds = array<i64: 1, 128>}, {transform_indices = @transform_13, window_bounds = array<i64: 64, 128>}, {pipeline_mode = #tpu.pipeline_mode<synchronous>, transform_indices = @transform_14, window_bounds = array<i64: 8, 128>}]} {
    %c0_i32 = arith.constant 0 : i32
    %0 = arith.cmpi eq, %arg0, %c0_i32 : i32
    %1 = arith.extui %0 : i1 to i32
    %c0_i32_0 = arith.constant 0 : i32
    %2 = arith.cmpi ne, %1, %c0_i32_0 : i32
    scf.if %2 {
      %c0_58 = arith.constant 0 : index
      %c0_59 = arith.constant 0 : index
      %88 = vector.load %arg1[%c0_58, %c0_59] : memref<8x128xf32, #tpu.memory_space<vmem>>, vector<8x128xf32>
      %c0_60 = arith.constant 0 : index
      %c0_61 = arith.constant 0 : index
      %89 = vector.load %arg16[%c0_60, %c0_61] : memref<8x128xf32, #tpu.memory_space<vmem>>, vector<8x128xf32>
      tpu.vector_store %arg16[%c0_60, %c0_61], %88 {strides = array<i32>} : memref<8x128xf32, #tpu.memory_space<vmem>>, vector<8x128xf32>,
    } else {
    }
    %c0 = arith.constant 0 : index
    %c0_1 = arith.constant 0 : index
    %3 = vector.load %arg2[%c0, %c0_1] : memref<64x16xbf16, #tpu.memory_space<vmem>>, vector<64x16xbf16>
    %c0_2 = arith.constant 0 : index
    %c0_3 = arith.constant 0 : index
    %4 = vector.load %arg3[%c0_2, %c0_3] : memref<16x384xbf16, #tpu.memory_space<vmem>>, vector<16x384xbf16>
    %cst = arith.constant dense<0.000000e+00> : vector<64x384xf32>
    %5 = tpu.matmul %3, %4, %cst {dimension_numbers = #tpu.dot_dimension_numbers<[1], [0], [0], [1], [0, 0, 1, 1], [], []>} : vector<64x16xbf16>, vector<16x384xbf16>, vector<64x384xf32> -> vector<64x384xf32>
    %6 = vector.extract_strided_slice %5 {offsets = [0, 0], sizes = [64, 256], strides = [1, 1]} : vector<64x384xf32> to vector<64x256xf32>
    %7 = vector.extract_strided_slice %5 {offsets = [0, 256], sizes = [64, 128], strides = [1, 1]} : vector<64x384xf32> to vector<64x128xf32>
    %c0_4 = arith.constant 0 : index
    %c0_5 = arith.constant 0 : index
    %8 = vector.load %arg5[%c0_4, %c0_5] : memref<1x128xf32, #tpu.memory_space<vmem>>, vector<1x128xf32>
    %9 = vector.broadcast %8 : vector<1x128xf32> to vector<64x128xf32>
    %10 = arith.addf %7, %9 : vector<64x128xf32>
    %c0_6 = arith.constant 0 : index
    %c0_7 = arith.constant 0 : index
    %11 = vector.load %arg4[%c0_6, %c0_7] : memref<128x128xbf16, #tpu.memory_space<vmem>>, vector<128x128xbf16>
    %c0_8 = arith.constant 0 : index
    %c0_9 = arith.constant 0 : index
    %12 = vector.load %arg16[%c0_8, %c0_9] : memref<8x128xf32, #tpu.memory_space<vmem>>, vector<8x128xf32>
    %c0_10 = arith.constant 0 : index
    %c0_11 = arith.constant 0 : index
    %13 = vector.load %arg17[%c0_10, %c0_11] : memref<64x128xf32, #tpu.memory_space<vmem>>, vector<8x128xf32>
    tpu.vector_store %arg17[%c0_10, %c0_11], %12 {strides = array<i32>} : memref<64x128xf32, #tpu.memory_space<vmem>>, vector<8x128xf32>,
    %14 = arith.truncf %12 : vector<8x128xf32> to vector<8x128xbf16>
    %cst_12 = arith.constant dense<0.000000e+00> : vector<8x128xf32>
    %15 = tpu.matmul %14, %11, %cst_12 {dimension_numbers = #tpu.dot_dimension_numbers<[1], [0], [0], [1], [0, 0, 1, 1], [], []>} : vector<8x128xbf16>, vector<128x128xbf16>, vector<8x128xf32> -> vector<8x128xf32>
    %16 = vector.extract_strided_slice %10 {offsets = [0, 0], sizes = [8, 128], strides = [1, 1]} : vector<64x128xf32> to vector<8x128xf32>
    %17 = arith.addf %15, %16 : vector<8x128xf32>
    %c8 = arith.constant 8 : index
    %c0_13 = arith.constant 0 : index
    %18 = vector.load %arg17[%c8, %c0_13] : memref<64x128xf32, #tpu.memory_space<vmem>>, vector<8x128xf32>
    tpu.vector_store %arg17[%c8, %c0_13], %17 {strides = array<i32>} : memref<64x128xf32, #tpu.memory_space<vmem>>, vector<8x128xf32>,
    %19 = arith.truncf %17 : vector<8x128xf32> to vector<8x128xbf16>
    %cst_14 = arith.constant dense<0.000000e+00> : vector<8x128xf32>
    %20 = tpu.matmul %19, %11, %cst_14 {dimension_numbers = #tpu.dot_dimension_numbers<[1], [0], [0], [1], [0, 0, 1, 1], [], []>} : vector<8x128xbf16>, vector<128x128xbf16>, vector<8x128xf32> -> vector<8x128xf32>
    %21 = vector.extract_strided_slice %10 {offsets = [8, 0], sizes = [8, 128], strides = [1, 1]} : vector<64x128xf32> to vector<8x128xf32>
    %22 = arith.addf %20, %21 : vector<8x128xf32>
    %c16 = arith.constant 16 : index
    %c0_15 = arith.constant 0 : index
    %23 = vector.load %arg17[%c16, %c0_15] : memref<64x128xf32, #tpu.memory_space<vmem>>, vector<8x128xf32>
    tpu.vector_store %arg17[%c16, %c0_15], %22 {strides = array<i32>} : memref<64x128xf32, #tpu.memory_space<vmem>>, vector<8x128xf32>,
    %24 = arith.truncf %22 : vector<8x128xf32> to vector<8x128xbf16>
    %cst_16 = arith.constant dense<0.000000e+00> : vector<8x128xf32>
    %25 = tpu.matmul %24, %11, %cst_16 {dimension_numbers = #tpu.dot_dimension_numbers<[1], [0], [0], [1], [0, 0, 1, 1], [], []>} : vector<8x128xbf16>, vector<128x128xbf16>, vector<8x128xf32> -> vector<8x128xf32>
    %26 = vector.extract_strided_slice %10 {offsets = [16, 0], sizes = [8, 128], strides = [1, 1]} : vector<64x128xf32> to vector<8x128xf32>
    %27 = arith.addf %25, %26 : vector<8x128xf32>
    %c24 = arith.constant 24 : index
    %c0_17 = arith.constant 0 : index
    %28 = vector.load %arg17[%c24, %c0_17] : memref<64x128xf32, #tpu.memory_space<vmem>>, vector<8x128xf32>
    tpu.vector_store %arg17[%c24, %c0_17], %27 {strides = array<i32>} : memref<64x128xf32, #tpu.memory_space<vmem>>, vector<8x128xf32>,
    %29 = arith.truncf %27 : vector<8x128xf32> to vector<8x128xbf16>
    %cst_18 = arith.constant dense<0.000000e+00> : vector<8x128xf32>
    %30 = tpu.matmul %29, %11, %cst_18 {dimension_numbers = #tpu.dot_dimension_numbers<[1], [0], [0], [1], [0, 0, 1, 1], [], []>} : vector<8x128xbf16>, vector<128x128xbf16>, vector<8x128xf32> -> vector<8x128xf32>
    %31 = vector.extract_strided_slice %10 {offsets = [24, 0], sizes = [8, 128], strides = [1, 1]} : vector<64x128xf32> to vector<8x128xf32>
    %32 = arith.addf %30, %31 : vector<8x128xf32>
    %c32 = arith.constant 32 : index
    %c0_19 = arith.constant 0 : index
    %33 = vector.load %arg17[%c32, %c0_19] : memref<64x128xf32, #tpu.memory_space<vmem>>, vector<8x128xf32>
    tpu.vector_store %arg17[%c32, %c0_19], %32 {strides = array<i32>} : memref<64x128xf32, #tpu.memory_space<vmem>>, vector<8x128xf32>,
    %34 = arith.truncf %32 : vector<8x128xf32> to vector<8x128xbf16>
    %cst_20 = arith.constant dense<0.000000e+00> : vector<8x128xf32>
    %35 = tpu.matmul %34, %11, %cst_20 {dimension_numbers = #tpu.dot_dimension_numbers<[1], [0], [0], [1], [0, 0, 1, 1], [], []>} : vector<8x128xbf16>, vector<128x128xbf16>, vector<8x128xf32> -> vector<8x128xf32>
    %36 = vector.extract_strided_slice %10 {offsets = [32, 0], sizes = [8, 128], strides = [1, 1]} : vector<64x128xf32> to vector<8x128xf32>
    %37 = arith.addf %35, %36 : vector<8x128xf32>
    %c40 = arith.constant 40 : index
    %c0_21 = arith.constant 0 : index
    %38 = vector.load %arg17[%c40, %c0_21] : memref<64x128xf32, #tpu.memory_space<vmem>>, vector<8x128xf32>
    tpu.vector_store %arg17[%c40, %c0_21], %37 {strides = array<i32>} : memref<64x128xf32, #tpu.memory_space<vmem>>, vector<8x128xf32>,
    %39 = arith.truncf %37 : vector<8x128xf32> to vector<8x128xbf16>
    %cst_22 = arith.constant dense<0.000000e+00> : vector<8x128xf32>
    %40 = tpu.matmul %39, %11, %cst_22 {dimension_numbers = #tpu.dot_dimension_numbers<[1], [0], [0], [1], [0, 0, 1, 1], [], []>} : vector<8x128xbf16>, vector<128x128xbf16>, vector<8x128xf32> -> vector<8x128xf32>
    %41 = vector.extract_strided_slice %10 {offsets = [40, 0], sizes = [8, 128], strides = [1, 1]} : vector<64x128xf32> to vector<8x128xf32>
    %42 = arith.addf %40, %41 : vector<8x128xf32>
    %c48 = arith.constant 48 : index
    %c0_23 = arith.constant 0 : index
    %43 = vector.load %arg17[%c48, %c0_23] : memref<64x128xf32, #tpu.memory_space<vmem>>, vector<8x128xf32>
    tpu.vector_store %arg17[%c48, %c0_23], %42 {strides = array<i32>} : memref<64x128xf32, #tpu.memory_space<vmem>>, vector<8x128xf32>,
    %44 = arith.truncf %42 : vector<8x128xf32> to vector<8x128xbf16>
    %cst_24 = arith.constant dense<0.000000e+00> : vector<8x128xf32>
    %45 = tpu.matmul %44, %11, %cst_24 {dimension_numbers = #tpu.dot_dimension_numbers<[1], [0], [0], [1], [0, 0, 1, 1], [], []>} : vector<8x128xbf16>, vector<128x128xbf16>, vector<8x128xf32> -> vector<8x128xf32>
    %46 = vector.extract_strided_slice %10 {offsets = [48, 0], sizes = [8, 128], strides = [1, 1]} : vector<64x128xf32> to vector<8x128xf32>
    %47 = arith.addf %45, %46 : vector<8x128xf32>
    %c56 = arith.constant 56 : index
    %c0_25 = arith.constant 0 : index
    %48 = vector.load %arg17[%c56, %c0_25] : memref<64x128xf32, #tpu.memory_space<vmem>>, vector<8x128xf32>
    tpu.vector_store %arg17[%c56, %c0_25], %47 {strides = array<i32>} : memref<64x128xf32, #tpu.memory_space<vmem>>, vector<8x128xf32>,
    %49 = arith.truncf %47 : vector<8x128xf32> to vector<8x128xbf16>
    %cst_26 = arith.constant dense<0.000000e+00> : vector<8x128xf32>
    %50 = tpu.matmul %49, %11, %cst_26 {dimension_numbers = #tpu.dot_dimension_numbers<[1], [0], [0], [1], [0, 0, 1, 1], [], []>} : vector<8x128xbf16>, vector<128x128xbf16>, vector<8x128xf32> -> vector<8x128xf32>
    %51 = vector.extract_strided_slice %10 {offsets = [56, 0], sizes = [8, 128], strides = [1, 1]} : vector<64x128xf32> to vector<8x128xf32>
    %52 = arith.addf %50, %51 : vector<8x128xf32>
    %c0_27 = arith.constant 0 : index
    %c0_28 = arith.constant 0 : index
    %53 = vector.load %arg16[%c0_27, %c0_28] : memref<8x128xf32, #tpu.memory_space<vmem>>, vector<8x128xf32>
    tpu.vector_store %arg16[%c0_27, %c0_28], %52 {strides = array<i32>} : memref<8x128xf32, #tpu.memory_space<vmem>>, vector<8x128xf32>,
    %c0_29 = arith.constant 0 : index
    %c0_30 = arith.constant 0 : index
    %54 = vector.load %arg15[%c0_29, %c0_30] : memref<8x128xf32, #tpu.memory_space<vmem>>, vector<8x128xf32>
    tpu.vector_store %arg15[%c0_29, %c0_30], %52 {strides = array<i32>} : memref<8x128xf32, #tpu.memory_space<vmem>>, vector<8x128xf32>,
    %c0_31 = arith.constant 0 : index
    %c0_32 = arith.constant 0 : index
    %55 = vector.load %arg17[%c0_31, %c0_32] : memref<64x128xf32, #tpu.memory_space<vmem>>, vector<64x128xf32>
    %56 = arith.truncf %55 : vector<64x128xf32> to vector<64x128xbf16>
    %c0_33 = arith.constant 0 : index
    %c0_34 = arith.constant 0 : index
    %57 = vector.load %arg6[%c0_33, %c0_34] : memref<128x256xbf16, #tpu.memory_space<vmem>>, vector<128x256xbf16>
    %cst_35 = arith.constant dense<0.000000e+00> : vector<64x256xf32>
    %58 = tpu.matmul %56, %57, %cst_35 {dimension_numbers = #tpu.dot_dimension_numbers<[1], [0], [0], [1], [0, 0, 1, 1], [], []>} : vector<64x128xbf16>, vector<128x256xbf16>, vector<64x256xf32> -> vector<64x256xf32>
    %59 = arith.addf %58, %6 : vector<64x256xf32>
    %c0_36 = arith.constant 0 : index
    %c0_37 = arith.constant 0 : index
    %60 = vector.load %arg7[%c0_36, %c0_37] : memref<1x256xf32, #tpu.memory_space<vmem>>, vector<1x256xf32>
    %61 = vector.broadcast %60 : vector<1x256xf32> to vector<64x256xf32>
    %62 = arith.addf %59, %61 : vector<64x256xf32>
    %cst_38 = arith.constant 0.000000e+00 : f32
    %63 = vector.broadcast %cst_38 : f32 to vector<64x256xf32>
    %64 = arith.maximumf %62, %63 : vector<64x256xf32>
    %65 = arith.truncf %64 : vector<64x256xf32> to vector<64x256xbf16>
    %c0_39 = arith.constant 0 : index
    %c0_40 = arith.constant 0 : index
    %66 = vector.load %arg8[%c0_39, %c0_40] : memref<256x256xbf16, #tpu.memory_space<vmem>>, vector<256x256xbf16>
    %cst_41 = arith.constant dense<0.000000e+00> : vector<64x256xf32>
    %67 = tpu.matmul %65, %66, %cst_41 {dimension_numbers = #tpu.dot_dimension_numbers<[1], [0], [0], [1], [0, 0, 1, 1], [], []>} : vector<64x256xbf16>, vector<256x256xbf16>, vector<64x256xf32> -> vector<64x256xf32>
    %c0_42 = arith.constant 0 : index
    %c0_43 = arith.constant 0 : index
    %68 = vector.load %arg9[%c0_42, %c0_43] : memref<1x256xf32, #tpu.memory_space<vmem>>, vector<1x256xf32>
    %69 = vector.broadcast %68 : vector<1x256xf32> to vector<64x256xf32>
    %70 = arith.addf %67, %69 : vector<64x256xf32>
    %cst_44 = arith.constant 0.000000e+00 : f32
    %71 = vector.broadcast %cst_44 : f32 to vector<64x256xf32>
    %72 = arith.maximumf %70, %71 : vector<64x256xf32>
    %73 = arith.truncf %72 : vector<64x256xf32> to vector<64x256xbf16>
    %c0_45 = arith.constant 0 : index
    %c0_46 = arith.constant 0 : index
    %74 = vector.load %arg10[%c0_45, %c0_46] : memref<256x128xbf16, #tpu.memory_space<vmem>>, vector<256x128xbf16>
    %cst_47 = arith.constant dense<0.000000e+00> : vector<64x128xf32>
    %75 = tpu.matmul %73, %74, %cst_47 {dimension_numbers = #tpu.dot_dimension_numbers<[1], [0], [0], [1], [0, 0, 1, 1], [], []>} : vector<64x256xbf16>, vector<256x128xbf16>, vector<64x128xf32> -> vector<64x128xf32>
    %c0_48 = arith.constant 0 : index
    %c0_49 = arith.constant 0 : index
    %76 = vector.load %arg11[%c0_48, %c0_49] : memref<1x128xf32, #tpu.memory_space<vmem>>, vector<1x128xf32>
    %77 = vector.broadcast %76 : vector<1x128xf32> to vector<64x128xf32>
    %78 = arith.addf %75, %77 : vector<64x128xf32>
    %cst_50 = arith.constant 0.000000e+00 : f32
    %79 = vector.broadcast %cst_50 : f32 to vector<64x128xf32>
    %80 = arith.maximumf %78, %79 : vector<64x128xf32>
    %81 = arith.truncf %80 : vector<64x128xf32> to vector<64x128xbf16>
    %c0_51 = arith.constant 0 : index
    %c0_52 = arith.constant 0 : index
    %82 = vector.load %arg12[%c0_51, %c0_52] : memref<128x128xbf16, #tpu.memory_space<vmem>>, vector<128x128xbf16>
    %cst_53 = arith.constant dense<0.000000e+00> : vector<64x128xf32>
    %83 = tpu.matmul %81, %82, %cst_53 {dimension_numbers = #tpu.dot_dimension_numbers<[1], [0], [0], [1], [0, 0, 1, 1], [], []>} : vector<64x128xbf16>, vector<128x128xbf16>, vector<64x128xf32> -> vector<64x128xf32>
    %c0_54 = arith.constant 0 : index
    %c0_55 = arith.constant 0 : index
    %84 = vector.load %arg13[%c0_54, %c0_55] : memref<1x128xf32, #tpu.memory_space<vmem>>, vector<1x128xf32>
    %85 = vector.broadcast %84 : vector<1x128xf32> to vector<64x128xf32>
    %86 = arith.addf %83, %85 : vector<64x128xf32>
    %c0_56 = arith.constant 0 : index
    %c0_57 = arith.constant 0 : index
    %87 = vector.load %arg14[%c0_56, %c0_57] : memref<64x128xf32, #tpu.memory_space<vmem>>, vector<64x128xf32>
    tpu.vector_store %arg14[%c0_56, %c0_57], %86 {strides = array<i32>} : memref<64x128xf32, #tpu.memory_space<vmem>>, vector<64x128xf32>,
    return
  }
  func.func @transform_0(%arg0: i32) -> (i32, i32) {
    %c0_i32 = arith.constant 0 : i32
    %c0_i32_0 = arith.constant 0 : i32
    %c0_i32_1 = arith.constant 0 : i32
    return %c0_i32, %c0_i32_0 : i32, i32
  }
  func.func @transform_1(%arg0: i32) -> (i32, i32) {
    %c0_i32 = arith.constant 0 : i32
    %c0_i32_0 = arith.constant 0 : i32
    return %arg0, %c0_i32 : i32, i32
  }
  func.func @transform_2(%arg0: i32) -> (i32, i32) {
    %c0_i32 = arith.constant 0 : i32
    %c0_i32_0 = arith.constant 0 : i32
    %c0_i32_1 = arith.constant 0 : i32
    return %c0_i32, %c0_i32_0 : i32, i32
  }
  func.func @transform_3(%arg0: i32) -> (i32, i32) {
    %c0_i32 = arith.constant 0 : i32
    %c0_i32_0 = arith.constant 0 : i32
    %c0_i32_1 = arith.constant 0 : i32
    return %c0_i32, %c0_i32_0 : i32, i32
  }
  func.func @transform_4(%arg0: i32) -> (i32, i32) {
    %c0_i32 = arith.constant 0 : i32
    %c0_i32_0 = arith.constant 0 : i32
    %c0_i32_1 = arith.constant 0 : i32
    return %c0_i32, %c0_i32_0 : i32, i32
  }
  func.func @transform_5(%arg0: i32) -> (i32, i32) {
    %c0_i32 = arith.constant 0 : i32
    %c0_i32_0 = arith.constant 0 : i32
    %c0_i32_1 = arith.constant 0 : i32
    return %c0_i32, %c0_i32_0 : i32, i32
  }
  func.func @transform_6(%arg0: i32) -> (i32, i32) {
    %c0_i32 = arith.constant 0 : i32
    %c0_i32_0 = arith.constant 0 : i32
    %c0_i32_1 = arith.constant 0 : i32
    return %c0_i32, %c0_i32_0 : i32, i32
  }
  func.func @transform_7(%arg0: i32) -> (i32, i32) {
    %c0_i32 = arith.constant 0 : i32
    %c0_i32_0 = arith.constant 0 : i32
    %c0_i32_1 = arith.constant 0 : i32
    return %c0_i32, %c0_i32_0 : i32, i32
  }
  func.func @transform_8(%arg0: i32) -> (i32, i32) {
    %c0_i32 = arith.constant 0 : i32
    %c0_i32_0 = arith.constant 0 : i32
    %c0_i32_1 = arith.constant 0 : i32
    return %c0_i32, %c0_i32_0 : i32, i32
  }
  func.func @transform_9(%arg0: i32) -> (i32, i32) {
    %c0_i32 = arith.constant 0 : i32
    %c0_i32_0 = arith.constant 0 : i32
    %c0_i32_1 = arith.constant 0 : i32
    return %c0_i32, %c0_i32_0 : i32, i32
  }
  func.func @transform_10(%arg0: i32) -> (i32, i32) {
    %c0_i32 = arith.constant 0 : i32
    %c0_i32_0 = arith.constant 0 : i32
    %c0_i32_1 = arith.constant 0 : i32
    return %c0_i32, %c0_i32_0 : i32, i32
  }
  func.func @transform_11(%arg0: i32) -> (i32, i32) {
    %c0_i32 = arith.constant 0 : i32
    %c0_i32_0 = arith.constant 0 : i32
    %c0_i32_1 = arith.constant 0 : i32
    return %c0_i32, %c0_i32_0 : i32, i32
  }
  func.func @transform_12(%arg0: i32) -> (i32, i32) {
    %c0_i32 = arith.constant 0 : i32
    %c0_i32_0 = arith.constant 0 : i32
    %c0_i32_1 = arith.constant 0 : i32
    return %c0_i32, %c0_i32_0 : i32, i32
  }
  func.func @transform_13(%arg0: i32) -> (i32, i32) {
    %c0_i32 = arith.constant 0 : i32
    %c0_i32_0 = arith.constant 0 : i32
    return %arg0, %c0_i32 : i32, i32
  }
  func.func @transform_14(%arg0: i32) -> (i32, i32) {
    %c0_i32 = arith.constant 0 : i32
    %c0_i32_0 = arith.constant 0 : i32
    %c0_i32_1 = arith.constant 0 : i32
    return %c0_i32, %c0_i32_0 : i32, i32
  }
}

</mosaic_0001>

<llo_original>
// kernel: rnn_forward_sequence.1
$region0: #{rnn_forward_sequence.1}
  #allocation0 [shape = 'u32[]', space=smem, size = 0x4, offset = 0x4, fixed_abs, tag = 'smem constant byte address 0x4 - core index']
  #allocation1 [shape = 'u32[144,128]{1,0:T(1,128)}', space=vmem, size = 0x12000, scoped, tag = 'internal scratch']
  #allocation2 [shape = 'f32[8,128]{1,0:T(8,128)}', space=vmem, size = 0x1000, scoped, tag = 'scratch operand']
  #allocation3 [shape = 'f32[64,128]{1,0:T(8,128)}', space=vmem, size = 0x8000, scoped, tag = 'scratch operand']
  %s0 = inlined_call_operand.vmem [shape: f32[8,128], index: 0, kind: input, shape index: {}]
  %s1 = inlined_call_operand.vmem [shape: bf16[64,16], index: 1, kind: input, shape index: {}]
  %s2 = inlined_call_operand.vmem [shape: bf16[16,384], index: 2, kind: input, shape index: {}]
  %s3 = inlined_call_operand.vmem [shape: bf16[128,128], index: 3, kind: input, shape index: {}]
  %s4 = inlined_call_operand.vmem [shape: f32[1,128], index: 4, kind: input, shape index: {}]
  %s5 = inlined_call_operand.vmem [shape: bf16[128,256], index: 5, kind: input, shape index: {}]
  %s6 = inlined_call_operand.vmem [shape: f32[1,256], index: 6, kind: input, shape index: {}]
  %s7 = inlined_call_operand.vmem [shape: bf16[256,256], index: 7, kind: input, shape index: {}]
  %s8 = inlined_call_operand.vmem [shape: f32[1,256], index: 8, kind: input, shape index: {}]
  %s9 = inlined_call_operand.vmem [shape: bf16[256,128], index: 9, kind: input, shape index: {}]
  %s10 = inlined_call_operand.vmem [shape: f32[1,128], index: 10, kind: input, shape index: {}]
  %s11 = inlined_call_operand.vmem [shape: bf16[128,128], index: 11, kind: input, shape index: {}]
  %s12 = inlined_call_operand.vmem [shape: f32[1,128], index: 12, kind: input, shape index: {}]
  %s13 = inlined_call_operand.hbm [shape: f32[64,128], index: 13, kind: output, shape index: {0}]
  %s14 = inlined_call_operand.hbm [shape: f32[8,128], index: 14, kind: output, shape index: {1}]
  %15 = xla_tuple %s13, %s14
  %s16 = sld [smem:[#allocation0]]
  $region74: #{rnn_forward_sequence.1} parent=0
    _
  %s18 = ssub.s32 1, %s16
  %s19 = scalar_select 0, %s18, %s16
  $region1: #{rnn_forward_sequence.1} parent=0
    #allocation4 [shape = 'u8[32768]{0}', space=vmem, size = 0x8000, scoped, tag = 'output window, operand 0, single buffered']
    #allocation5 [shape = 's32[1]{0}', space=sflag, size = 0x4, scoped, tag = 'scoped memory for rnn_forward_sequence.1']
    #allocation6 [shape = 'u8[4096]{0}', space=vmem, size = 0x1000, scoped, tag = 'output window, operand 1, single buffered']
    #allocation7 [shape = 's32[1]{0}', space=sflag, size = 0x4, scoped, tag = 'scoped memory for rnn_forward_sequence.1']
    %20 = vsyncpa [#allocation5], 0
    %21 = vsyncpa [#allocation7], 0
    // Predicated region
    $region2: #{rnn_forward_sequence.1} parent=1 // pred_check
      _
    $region3: #{rnn_forward_sequence.1} parent=1 // pred_check_branch
      %23 = sbr.rel (0) target = $region5
    $region4: #{rnn_forward_sequence.1} parent=1 // pred_region
      _
    $region5: #{rnn_forward_sequence.1} parent=1 // pred_fallthru
      _
    // Predicated region
    $region6: #{rnn_forward_sequence.1} parent=1 // pred_check
      _
    $region7: #{rnn_forward_sequence.1} parent=1 // pred_check_branch
      %25 = sbr.rel (0) target = $region9
    $region8: #{rnn_forward_sequence.1} parent=1 // pred_region
      _
    $region9: #{rnn_forward_sequence.1} parent=1 // pred_fallthru
      _
    // Predicated region
    $region10: #{rnn_forward_sequence.1} parent=1 // pred_check
      _
    $region11: #{rnn_forward_sequence.1} parent=1 // pred_check_branch
      %27 = sbr.rel (0) target = $region13
    $region12: #{rnn_forward_sequence.1} parent=1 // pred_region
      _
    $region13: #{rnn_forward_sequence.1} parent=1 // pred_fallthru
      _
    // Predicated region
    $region14: #{rnn_forward_sequence.1} parent=1 // pred_check
      _
    $region15: #{rnn_forward_sequence.1} parent=1 // pred_check_branch
      %29 = sbr.rel (0) target = $region17
    $region16: #{rnn_forward_sequence.1} parent=1 // pred_region
      _
    $region17: #{rnn_forward_sequence.1} parent=1 // pred_fallthru
      _
    // Predicated region
    $region18: #{rnn_forward_sequence.1} parent=1 // pred_check
      _
    $region19: #{rnn_forward_sequence.1} parent=1 // pred_check_branch
      %31 = sbr.rel (0) target = $region21
    $region20: #{rnn_forward_sequence.1} parent=1 // pred_region
      _
    $region21: #{rnn_forward_sequence.1} parent=1 // pred_fallthru
      _
    // Predicated region
    $region22: #{rnn_forward_sequence.1} parent=1 // pred_check
      _
    $region23: #{rnn_forward_sequence.1} parent=1 // pred_check_branch
      %33 = sbr.rel (0) target = $region25
    $region24: #{rnn_forward_sequence.1} parent=1 // pred_region
      _
    $region25: #{rnn_forward_sequence.1} parent=1 // pred_fallthru
      _
    // Predicated region
    $region26: #{rnn_forward_sequence.1} parent=1 // pred_check
      _
    $region27: #{rnn_forward_sequence.1} parent=1 // pred_check_branch
      %35 = sbr.rel (0) target = $region29
    $region28: #{rnn_forward_sequence.1} parent=1 // pred_region
      _
    $region29: #{rnn_forward_sequence.1} parent=1 // pred_fallthru
      _
    // Predicated region
    $region30: #{rnn_forward_sequence.1} parent=1 // pred_check
      _
    $region31: #{rnn_forward_sequence.1} parent=1 // pred_check_branch
      %37 = sbr.rel (0) target = $region33
    $region32: #{rnn_forward_sequence.1} parent=1 // pred_region
      _
    $region33: #{rnn_forward_sequence.1} parent=1 // pred_fallthru
      _
    // Predicated region
    $region34: #{rnn_forward_sequence.1} parent=1 // pred_check
      _
    $region35: #{rnn_forward_sequence.1} parent=1 // pred_check_branch
      %39 = sbr.rel (0) target = $region37
    $region36: #{rnn_forward_sequence.1} parent=1 // pred_region
      _
    $region37: #{rnn_forward_sequence.1} parent=1 // pred_fallthru
      _
    // Predicated region
    $region38: #{rnn_forward_sequence.1} parent=1 // pred_check
      _
    $region39: #{rnn_forward_sequence.1} parent=1 // pred_check_branch
      %41 = sbr.rel (0) target = $region41
    $region40: #{rnn_forward_sequence.1} parent=1 // pred_region
      _
    $region41: #{rnn_forward_sequence.1} parent=1 // pred_fallthru
      _
    // Predicated region
    $region42: #{rnn_forward_sequence.1} parent=1 // pred_check
      _
    $region43: #{rnn_forward_sequence.1} parent=1 // pred_check_branch
      %43 = sbr.rel (0) target = $region45
    $region44: #{rnn_forward_sequence.1} parent=1 // pred_region
      _
    $region45: #{rnn_forward_sequence.1} parent=1 // pred_fallthru
      _
    // Predicated region
    $region46: #{rnn_forward_sequence.1} parent=1 // pred_check
      _
    $region47: #{rnn_forward_sequence.1} parent=1 // pred_check_branch
      %45 = sbr.rel (0) target = $region49
    $region48: #{rnn_forward_sequence.1} parent=1 // pred_region
      _
    $region49: #{rnn_forward_sequence.1} parent=1 // pred_fallthru
      _
    // Predicated region
    $region50: #{rnn_forward_sequence.1} parent=1 // pred_check
      _
    $region51: #{rnn_forward_sequence.1} parent=1 // pred_check_branch
      %47 = sbr.rel (0) target = $region53
    $region52: #{rnn_forward_sequence.1} parent=1 // pred_region
      _
    $region53: #{rnn_forward_sequence.1} parent=1 // pred_fallthru
      _
    %p49 = scmp.eq.s32.totalorder 0, 0
    // Predicated region
    $region54: #{rnn_forward_sequence.1} parent=1 // pred_check
      %p50 = pneg %p49
    $region55: #{rnn_forward_sequence.1} parent=1 // pred_check_branch
      %52 = sbr.rel (%p50) target = $region57
    $region56: #{rnn_forward_sequence.1} parent=1 // pred_region
      %v53 = vld [vmem:[%s0] sm:$0xff]
      %54 = vst [vmem:[#allocation2] sm:$0xff] %v53
    $region57: #{rnn_forward_sequence.1} parent=1 // pred_fallthru
      _
    %v55 = vld [vmem:[%s1] sm:$0xf]
    %v56 = vld [vmem:[%s1 + $0x4] sm:$0xf]
    %v57 = vld [vmem:[%s1 + $0x8] sm:$0xf]
    %v58 = vld [vmem:[%s1 + $0xc] sm:$0xf]
    %v59 = vld [vmem:[%s1 + $0x10] sm:$0xf]
    %v60 = vld [vmem:[%s1 + $0x14] sm:$0xf]
    %v61 = vld [vmem:[%s1 + $0x18] sm:$0xf]
    %v62 = vld [vmem:[%s1 + $0x1c] sm:$0xf]
    %v63 = vld [vmem:[%s2] sm:$0xff]
    %v64 = vld [vmem:[%s2 + $0x8] sm:$0xf]
    %v65 = vld [vmem:[%s2 + $0xc] sm:$0xff]
    %v66 = vld [vmem:[%s2 + $0x14] sm:$0xf]
    %v75 = vunpack.c.l.b16 %v55
    %v76 = vunpack.c.l.b16 %v56
    %v77 = vunpack.c.l.b16 %v57
    %v78 = vunpack.c.l.b16 %v58
    %v79 = vunpack.c.l.b16 %v59
    %v80 = vunpack.c.l.b16 %v60
    %v81 = vunpack.c.l.b16 %v61
    %v82 = vunpack.c.l.b16 %v62
    %v83 = vpack.c.b16 %v76, %v75
    %v84 = vpack.c.b16 %v78, %v77
    %v85 = vpack.c.b16 %v80, %v79
    %v86 = vpack.c.b16 %v82, %v81
    %v91 = vunpack.c.l.b16 %v63
    %v92 = vunpack.c.h.b16 %v63
    %v93 = vunpack.c.l.b16 %v64
    %v94 = vunpack.c.l.b16 %v65
    %v95 = vunpack.c.h.b16 %v65
    %v96 = vunpack.c.l.b16 %v66
    %v97 = vpack.c.b16 %v94, %v91
    %v98 = vpack.c.b16 %v95, %v92
    %v99 = vpack.c.b16 %v96, %v93
    %vm103 = vcmask 130048
    %v105 = vsel %vm103, %v83, 0
    %v108 = vsel %vm103, %v84, 0
    %v111 = vsel %vm103, %v85, 0
    %v114 = vsel %vm103, %v86, 0
    %116 = vmatprep.subr.bf16.mxu0 0
    %117 = vmatpush1.bf16.msra.mxu0 0
    %118 = vmatprep.subr.bf16.mxu0 0
    %119 = vmatpush1.bf16.msra.mxu0 0
    %120 = vmatprep.subr.bf16.mxu0 0
    %121 = vmatpush1.bf16.msra.mxu0 0
    %122 = vmatprep.subr.bf16.mxu0 0
    %123 = vmatpush1.bf16.msra.mxu0 0
    %124 = vmatprep.subr.bf16.mxu0 0
    %125 = vmatpush1.bf16.msra.mxu0 0
    %126 = vmatprep.subr.bf16.mxu0 0
    %127 = vmatpush1.bf16.msra.mxu0 0
    %128 = vmatprep.subr.bf16.mxu0 0
    %129 = vmatpush1.bf16.msra.mxu0 0
    %130 = vmatprep.subr.bf16.mxu0 %v98
    %131 = vmatpush1.bf16.msra.mxu0 %v97
    %132 = vmatprep.subr.bf16.mxu0 0
    %133 = vmatpush2.bf16.msra.mxu0 0
    %134 = vmatprep.subr.bf16.mxu0 0
    %135 = vmatpush2.bf16.msra.mxu0 0
    %136 = vmatprep.subr.bf16.mxu0 0
    %137 = vmatpush2.bf16.msra.mxu0 0
    %138 = vmatprep.subr.bf16.mxu0 0
    %139 = vmatpush2.bf16.msra.mxu0 0
    %140 = vmatprep.subr.bf16.mxu0 0
    %141 = vmatpush2.bf16.msra.mxu0 0
    %142 = vmatprep.subr.bf16.mxu0 0
    %143 = vmatpush2.bf16.msra.mxu0 0
    %144 = vmatprep.subr.bf16.mxu0 0
    %145 = vmatpush2.bf16.msra.mxu0 0
    %146 = vmatprep.subr.bf16.mxu0 0
    %147 = vmatpush2.bf16.msra.mxu0 0
    %148 = vmatprep.mubr.bf16.mxu0 0
    %149 = vmatmul.mubr.bf16.gmra.mxu0 %v105
    %v150 = vpop.f32.mrf.mxu0
    %v151 = vadd.f32 0.0, %v150
    %v152 = vpop.f32.mrf.mxu0
    %v153 = vadd.f32 0.0, %v152
    %v154 = vpop.f32.mrf.mxu0
    %v155 = vadd.f32 0.0, %v154
    %v156 = vpop.f32.mrf.mxu0
    %v157 = vadd.f32 0.0, %v156
    %158 = vmatprep.mubr.bf16.mxu0 0
    %159 = vmatmul.mubr.bf16.gmra.mxu0 %v108
    %v160 = vpop.f32.mrf.mxu0
    %v161 = vadd.f32 0.0, %v160
    %v162 = vpop.f32.mrf.mxu0
    %v163 = vadd.f32 0.0, %v162
    %v164 = vpop.f32.mrf.mxu0
    %v165 = vadd.f32 0.0, %v164
    %v166 = vpop.f32.mrf.mxu0
    %v167 = vadd.f32 0.0, %v166
    %168 = vmatprep.mubr.bf16.mxu0 0
    %169 = vmatmul.mubr.bf16.gmra.mxu0 %v111
    %v170 = vpop.f32.mrf.mxu0
    %v171 = vadd.f32 0.0, %v170
    %v172 = vpop.f32.mrf.mxu0
    %v173 = vadd.f32 0.0, %v172
    %v174 = vpop.f32.mrf.mxu0
    %v175 = vadd.f32 0.0, %v174
    %v176 = vpop.f32.mrf.mxu0
    %v177 = vadd.f32 0.0, %v176
    %178 = vmatprep.mubr.bf16.mxu0 0
    %179 = vmatmul.mubr.bf16.gmra.mxu0 %v114
    %v180 = vpop.f32.mrf.mxu0
    %v181 = vadd.f32 0.0, %v180
    %v182 = vpop.f32.mrf.mxu0
    %v183 = vadd.f32 0.0, %v182
    %v184 = vpop.f32.mrf.mxu0
    %v185 = vadd.f32 0.0, %v184
    %v186 = vpop.f32.mrf.mxu0
    %v187 = vadd.f32 0.0, %v186
    %188 = vdwg.mxu0
    %189 = vmatprep.subr.bf16.mxu0 0
    %190 = vmatpush1.bf16.msra.mxu0 0
    %191 = vmatprep.subr.bf16.mxu0 0
    %192 = vmatpush1.bf16.msra.mxu0 0
    %193 = vmatprep.subr.bf16.mxu0 0
    %194 = vmatpush1.bf16.msra.mxu0 0
    %195 = vmatprep.subr.bf16.mxu0 0
    %196 = vmatpush1.bf16.msra.mxu0 0
    %197 = vmatprep.subr.bf16.mxu0 0
    %198 = vmatpush1.bf16.msra.mxu0 0
    %199 = vmatprep.subr.bf16.mxu0 0
    %200 = vmatpush1.bf16.msra.mxu0 0
    %201 = vmatprep.subr.bf16.mxu0 0
    %202 = vmatpush1.bf16.msra.mxu0 0
    %203 = vmatprep.subr.bf16.mxu0 0
    %204 = vmatpush1.bf16.msra.mxu0 %v99
    %205 = vmatprep.subr.bf16.mxu0 0
    %206 = vmatpush2.bf16.msra.mxu0 0
    %207 = vmatprep.subr.bf16.mxu0 0
    %208 = vmatpush2.bf16.msra.mxu0 0
    %209 = vmatprep.subr.bf16.mxu0 0
    %210 = vmatpush2.bf16.msra.mxu0 0
    %211 = vmatprep.subr.bf16.mxu0 0
    %212 = vmatpush2.bf16.msra.mxu0 0
    %213 = vmatprep.subr.bf16.mxu0 0
    %214 = vmatpush2.bf16.msra.mxu0 0
    %215 = vmatprep.subr.bf16.mxu0 0
    %216 = vmatpush2.bf16.msra.mxu0 0
    %217 = vmatprep.subr.bf16.mxu0 0
    %218 = vmatpush2.bf16.msra.mxu0 0
    %219 = vmatprep.subr.bf16.mxu0 0
    %220 = vmatpush2.bf16.msra.mxu0 0
    %221 = vmatprep.mubr.bf16.mxu0 0
    %222 = vmatmul.mubr.bf16.gmra.mxu0 %v105
    %v223 = vpop.f32.mrf.mxu0
    %v224 = vadd.f32 0.0, %v223
    %v225 = vpop.f32.mrf.mxu0
    %v226 = vpop.f32.mrf.mxu0
    %v227 = vadd.f32 0.0, %v226
    %v228 = vpop.f32.mrf.mxu0
    %229 = vmatprep.mubr.bf16.mxu0 0
    %230 = vmatmul.mubr.bf16.gmra.mxu0 %v108
    %v231 = vpop.f32.mrf.mxu0
    %v232 = vadd.f32 0.0, %v231
    %v233 = vpop.f32.mrf.mxu0
    %v234 = vpop.f32.mrf.mxu0
    %v235 = vadd.f32 0.0, %v234
    %v236 = vpop.f32.mrf.mxu0
    %237 = vmatprep.mubr.bf16.mxu0 0
    %238 = vmatmul.mubr.bf16.gmra.mxu0 %v111
    %v239 = vpop.f32.mrf.mxu0
    %v240 = vadd.f32 0.0, %v239
    %v241 = vpop.f32.mrf.mxu0
    %v242 = vpop.f32.mrf.mxu0
    %v243 = vadd.f32 0.0, %v242
    %v244 = vpop.f32.mrf.mxu0
    %245 = vmatprep.mubr.bf16.mxu0 0
    %246 = vmatmul.mubr.bf16.gmra.mxu0 %v114
    %v247 = vpop.f32.mrf.mxu0
    %v248 = vadd.f32 0.0, %v247
    %v249 = vpop.f32.mrf.mxu0
    %v250 = vpop.f32.mrf.mxu0
    %v251 = vadd.f32 0.0, %v250
    %v252 = vpop.f32.mrf.mxu0
    %253 = vdwg.mxu0
    %v254 = vld [vmem:[%s4] sm:$0x1]
    %v256 = vlaneseq
    %v257 = vshrl.u32 %v256, 7
    %v258 = vsub.s32 0, %v257
    %v259 = vrot.slane %v254, %v258
    %v261 = vadd.f32 %v224, %v259
    %v262 = vadd.f32 %v227, %v259
    %v263 = vadd.f32 %v232, %v259
    %v264 = vadd.f32 %v235, %v259
    %v265 = vadd.f32 %v240, %v259
    %v266 = vadd.f32 %v243, %v259
    %v267 = vadd.f32 %v248, %v259
    %v268 = vadd.f32 %v251, %v259
    %v269 = vld [vmem:[%s3] sm:$0xf]
    %v270 = vld [vmem:[%s3 + $0x4] sm:$0xf]
    %v271 = vld [vmem:[%s3 + $0x8] sm:$0xf]
    %v272 = vld [vmem:[%s3 + $0xc] sm:$0xf]
    %v273 = vld [vmem:[%s3 + $0x10] sm:$0xf]
    %v274 = vld [vmem:[%s3 + $0x14] sm:$0xf]
    %v275 = vld [vmem:[%s3 + $0x18] sm:$0xf]
    %v276 = vld [vmem:[%s3 + $0x1c] sm:$0xf]
    %v277 = vld [vmem:[%s3 + $0x20] sm:$0xf]
    %v278 = vld [vmem:[%s3 + $0x24] sm:$0xf]
    %v279 = vld [vmem:[%s3 + $0x28] sm:$0xf]
    %v280 = vld [vmem:[%s3 + $0x2c] sm:$0xf]
    %v281 = vld [vmem:[%s3 + $0x30] sm:$0xf]
    %v282 = vld [vmem:[%s3 + $0x34] sm:$0xf]
    %v283 = vld [vmem:[%s3 + $0x38] sm:$0xf]
    %v284 = vld [vmem:[%s3 + $0x3c] sm:$0xf]
    %v285 = vld [vmem:[#allocation2] sm:$0xff]
    %286 = vst [vmem:[#allocation3] sm:$0xff] %v285
    %v287 = vpack.c.bf16 %v285, %v285
    %v304 = vunpack.c.l.b16 %v269
    %v305 = vunpack.c.l.b16 %v270
    %v306 = vunpack.c.l.b16 %v271
    %v307 = vunpack.c.l.b16 %v272
    %v308 = vunpack.c.l.b16 %v273
    %v309 = vunpack.c.l.b16 %v274
    %v310 = vunpack.c.l.b16 %v275
    %v311 = vunpack.c.l.b16 %v276
    %v312 = vunpack.c.l.b16 %v277
    %v313 = vunpack.c.l.b16 %v278
    %v314 = vunpack.c.l.b16 %v279
    %v315 = vunpack.c.l.b16 %v280
    %v316 = vunpack.c.l.b16 %v281
    %v317 = vunpack.c.l.b16 %v282
    %v318 = vunpack.c.l.b16 %v283
    %v319 = vunpack.c.l.b16 %v284
    %v320 = vpack.c.b16 %v305, %v304
    %v321 = vpack.c.b16 %v307, %v306
    %v322 = vpack.c.b16 %v309, %v308
    %v323 = vpack.c.b16 %v311, %v310
    %v324 = vpack.c.b16 %v313, %v312
    %v325 = vpack.c.b16 %v315, %v314
    %v326 = vpack.c.b16 %v317, %v316
    %v327 = vpack.c.b16 %v319, %v318
    %336 = vmatprep.subr.bf16.mxu0 0
    %337 = vmatpush1.bf16.msra.mxu0 %v327
    %338 = vmatprep.subr.bf16.mxu0 0
    %339 = vmatpush1.bf16.msra.mxu0 %v326
    %340 = vmatprep.subr.bf16.mxu0 0
    %341 = vmatpush1.bf16.msra.mxu0 %v325
    %342 = vmatprep.subr.bf16.mxu0 0
    %343 = vmatpush1.bf16.msra.mxu0 %v324
    %344 = vmatprep.subr.bf16.mxu0 0
    %345 = vmatpush1.bf16.msra.mxu0 %v323
    %346 = vmatprep.subr.bf16.mxu0 0
    %347 = vmatpush1.bf16.msra.mxu0 %v322
    %348 = vmatprep.subr.bf16.mxu0 0
    %349 = vmatpush1.bf16.msra.mxu0 %v321
    %350 = vmatprep.subr.bf16.mxu0 0
    %351 = vmatpush1.bf16.msra.mxu0 %v320
    %352 = vmatprep.subr.bf16.mxu0 0
    %353 = vmatpush2.bf16.msra.mxu0 0
    %354 = vmatprep.subr.bf16.mxu0 0
    %355 = vmatpush2.bf16.msra.mxu0 0
    %356 = vmatprep.subr.bf16.mxu0 0
    %357 = vmatpush2.bf16.msra.mxu0 0
    %358 = vmatprep.subr.bf16.mxu0 0
    %359 = vmatpush2.bf16.msra.mxu0 0
    %360 = vmatprep.subr.bf16.mxu0 0
    %361 = vmatpush2.bf16.msra.mxu0 0
    %362 = vmatprep.subr.bf16.mxu0 0
    %363 = vmatpush2.bf16.msra.mxu0 0
    %364 = vmatprep.subr.bf16.mxu0 0
    %365 = vmatpush2.bf16.msra.mxu0 0
    %366 = vmatprep.subr.bf16.mxu0 0
    %367 = vmatpush2.bf16.msra.mxu0 0
    %368 = vmatprep.mubr.bf16.mxu0 0
    %369 = vmatmul.mubr.bf16.gmra.mxu0 %v287
    %v370 = vpop.f32.mrf.mxu0
    %v371 = vadd.f32 %v261, %v370
    %v372 = vpop.f32.mrf.mxu0
    %v373 = vpop.f32.mrf.mxu0
    %v374 = vpop.f32.mrf.mxu0
    %375 = vdwg.mxu0
    %376 = vst [vmem:[#allocation3 + $0x8] sm:$0xff] %v371
    %v377 = vpack.c.bf16 %v371, %v371
    %378 = vmatprep.subr.bf16.mxu0 0
    %379 = vmatpush1.bf16.msra.mxu0 %v327
    %380 = vmatprep.subr.bf16.mxu0 0
    %381 = vmatpush1.bf16.msra.mxu0 %v326
    %382 = vmatprep.subr.bf16.mxu0 0
    %383 = vmatpush1.bf16.msra.mxu0 %v325
    %384 = vmatprep.subr.bf16.mxu0 0
    %385 = vmatpush1.bf16.msra.mxu0 %v324
    %386 = vmatprep.subr.bf16.mxu0 0
    %387 = vmatpush1.bf16.msra.mxu0 %v323
    %388 = vmatprep.subr.bf16.mxu0 0
    %389 = vmatpush1.bf16.msra.mxu0 %v322
    %390 = vmatprep.subr.bf16.mxu0 0
    %391 = vmatpush1.bf16.msra.mxu0 %v321
    %392 = vmatprep.subr.bf16.mxu0 0
    %393 = vmatpush1.bf16.msra.mxu0 %v320
    %394 = vmatprep.subr.bf16.mxu0 0
    %395 = vmatpush2.bf16.msra.mxu0 0
    %396 = vmatprep.subr.bf16.mxu0 0
    %397 = vmatpush2.bf16.msra.mxu0 0
    %398 = vmatprep.subr.bf16.mxu0 0
    %399 = vmatpush2.bf16.msra.mxu0 0
    %400 = vmatprep.subr.bf16.mxu0 0
    %401 = vmatpush2.bf16.msra.mxu0 0
    %402 = vmatprep.subr.bf16.mxu0 0
    %403 = vmatpush2.bf16.msra.mxu0 0
    %404 = vmatprep.subr.bf16.mxu0 0
    %405 = vmatpush2.bf16.msra.mxu0 0
    %406 = vmatprep.subr.bf16.mxu0 0
    %407 = vmatpush2.bf16.msra.mxu0 0
    %408 = vmatprep.subr.bf16.mxu0 0
    %409 = vmatpush2.bf16.msra.mxu0 0
    %410 = vmatprep.mubr.bf16.mxu0 0
    %411 = vmatmul.mubr.bf16.gmra.mxu0 %v377
    %v412 = vpop.f32.mrf.mxu0
    %v413 = vadd.f32 %v262, %v412
    %v414 = vpop.f32.mrf.mxu0
    %v415 = vpop.f32.mrf.mxu0
    %v416 = vpop.f32.mrf.mxu0
    %417 = vdwg.mxu0
    %418 = vst [vmem:[#allocation3 + $0x10] sm:$0xff] %v413
    %v419 = vpack.c.bf16 %v413, %v413
    %420 = vmatprep.subr.bf16.mxu0 0
    %421 = vmatpush1.bf16.msra.mxu0 %v327
    %422 = vmatprep.subr.bf16.mxu0 0
    %423 = vmatpush1.bf16.msra.mxu0 %v326
    %424 = vmatprep.subr.bf16.mxu0 0
    %425 = vmatpush1.bf16.msra.mxu0 %v325
    %426 = vmatprep.subr.bf16.mxu0 0
    %427 = vmatpush1.bf16.msra.mxu0 %v324
    %428 = vmatprep.subr.bf16.mxu0 0
    %429 = vmatpush1.bf16.msra.mxu0 %v323
    %430 = vmatprep.subr.bf16.mxu0 0
    %431 = vmatpush1.bf16.msra.mxu0 %v322
    %432 = vmatprep.subr.bf16.mxu0 0
    %433 = vmatpush1.bf16.msra.mxu0 %v321
    %434 = vmatprep.subr.bf16.mxu0 0
    %435 = vmatpush1.bf16.msra.mxu0 %v320
    %436 = vmatprep.subr.bf16.mxu0 0
    %437 = vmatpush2.bf16.msra.mxu0 0
    %438 = vmatprep.subr.bf16.mxu0 0
    %439 = vmatpush2.bf16.msra.mxu0 0
    %440 = vmatprep.subr.bf16.mxu0 0
    %441 = vmatpush2.bf16.msra.mxu0 0
    %442 = vmatprep.subr.bf16.mxu0 0
    %443 = vmatpush2.bf16.msra.mxu0 0
    %444 = vmatprep.subr.bf16.mxu0 0
    %445 = vmatpush2.bf16.msra.mxu0 0
    %446 = vmatprep.subr.bf16.mxu0 0
    %447 = vmatpush2.bf16.msra.mxu0 0
    %448 = vmatprep.subr.bf16.mxu0 0
    %449 = vmatpush2.bf16.msra.mxu0 0
    %450 = vmatprep.subr.bf16.mxu0 0
    %451 = vmatpush2.bf16.msra.mxu0 0
    %452 = vmatprep.mubr.bf16.mxu0 0
    %453 = vmatmul.mubr.bf16.gmra.mxu0 %v419
    %v454 = vpop.f32.mrf.mxu0
    %v455 = vadd.f32 %v263, %v454
    %v456 = vpop.f32.mrf.mxu0
    %v457 = vpop.f32.mrf.mxu0
    %v458 = vpop.f32.mrf.mxu0
    %459 = vdwg.mxu0
    %460 = vst [vmem:[#allocation3 + $0x18] sm:$0xff] %v455
    %v461 = vpack.c.bf16 %v455, %v455
    %462 = vmatprep.subr.bf16.mxu0 0
    %463 = vmatpush1.bf16.msra.mxu0 %v327
    %464 = vmatprep.subr.bf16.mxu0 0
    %465 = vmatpush1.bf16.msra.mxu0 %v326
    %466 = vmatprep.subr.bf16.mxu0 0
    %467 = vmatpush1.bf16.msra.mxu0 %v325
    %468 = vmatprep.subr.bf16.mxu0 0
    %469 = vmatpush1.bf16.msra.mxu0 %v324
    %470 = vmatprep.subr.bf16.mxu0 0
    %471 = vmatpush1.bf16.msra.mxu0 %v323
    %472 = vmatprep.subr.bf16.mxu0 0
    %473 = vmatpush1.bf16.msra.mxu0 %v322
    %474 = vmatprep.subr.bf16.mxu0 0
    %475 = vmatpush1.bf16.msra.mxu0 %v321
    %476 = vmatprep.subr.bf16.mxu0 0
    %477 = vmatpush1.bf16.msra.mxu0 %v320
    %478 = vmatprep.subr.bf16.mxu0 0
    %479 = vmatpush2.bf16.msra.mxu0 0
    %480 = vmatprep.subr.bf16.mxu0 0
    %481 = vmatpush2.bf16.msra.mxu0 0
    %482 = vmatprep.subr.bf16.mxu0 0
    %483 = vmatpush2.bf16.msra.mxu0 0
    %484 = vmatprep.subr.bf16.mxu0 0
    %485 = vmatpush2.bf16.msra.mxu0 0
    %486 = vmatprep.subr.bf16.mxu0 0
    %487 = vmatpush2.bf16.msra.mxu0 0
    %488 = vmatprep.subr.bf16.mxu0 0
    %489 = vmatpush2.bf16.msra.mxu0 0
    %490 = vmatprep.subr.bf16.mxu0 0
    %491 = vmatpush2.bf16.msra.mxu0 0
    %492 = vmatprep.subr.bf16.mxu0 0
    %493 = vmatpush2.bf16.msra.mxu0 0
    %494 = vmatprep.mubr.bf16.mxu0 0
    %495 = vmatmul.mubr.bf16.gmra.mxu0 %v461
    %v496 = vpop.f32.mrf.mxu0
    %v497 = vadd.f32 %v264, %v496
    %v498 = vpop.f32.mrf.mxu0
    %v499 = vpop.f32.mrf.mxu0
    %v500 = vpop.f32.mrf.mxu0
    %501 = vdwg.mxu0
    %502 = vst [vmem:[#allocation3 + $0x20] sm:$0xff] %v497
    %v503 = vpack.c.bf16 %v497, %v497
    %504 = vmatprep.subr.bf16.mxu0 0
    %505 = vmatpush1.bf16.msra.mxu0 %v327
    %506 = vmatprep.subr.bf16.mxu0 0
    %507 = vmatpush1.bf16.msra.mxu0 %v326
    %508 = vmatprep.subr.bf16.mxu0 0
    %509 = vmatpush1.bf16.msra.mxu0 %v325
    %510 = vmatprep.subr.bf16.mxu0 0
    %511 = vmatpush1.bf16.msra.mxu0 %v324
    %512 = vmatprep.subr.bf16.mxu0 0
    %513 = vmatpush1.bf16.msra.mxu0 %v323
    %514 = vmatprep.subr.bf16.mxu0 0
    %515 = vmatpush1.bf16.msra.mxu0 %v322
    %516 = vmatprep.subr.bf16.mxu0 0
    %517 = vmatpush1.bf16.msra.mxu0 %v321
    %518 = vmatprep.subr.bf16.mxu0 0
    %519 = vmatpush1.bf16.msra.mxu0 %v320
    %520 = vmatprep.subr.bf16.mxu0 0
    %521 = vmatpush2.bf16.msra.mxu0 0
    %522 = vmatprep.subr.bf16.mxu0 0
    %523 = vmatpush2.bf16.msra.mxu0 0
    %524 = vmatprep.subr.bf16.mxu0 0
    %525 = vmatpush2.bf16.msra.mxu0 0
    %526 = vmatprep.subr.bf16.mxu0 0
    %527 = vmatpush2.bf16.msra.mxu0 0
    %528 = vmatprep.subr.bf16.mxu0 0
    %529 = vmatpush2.bf16.msra.mxu0 0
    %530 = vmatprep.subr.bf16.mxu0 0
    %531 = vmatpush2.bf16.msra.mxu0 0
    %532 = vmatprep.subr.bf16.mxu0 0
    %533 = vmatpush2.bf16.msra.mxu0 0
    %534 = vmatprep.subr.bf16.mxu0 0
    %535 = vmatpush2.bf16.msra.mxu0 0
    %536 = vmatprep.mubr.bf16.mxu0 0
    %537 = vmatmul.mubr.bf16.gmra.mxu0 %v503
    %v538 = vpop.f32.mrf.mxu0
    %v539 = vadd.f32 %v265, %v538
    %v540 = vpop.f32.mrf.mxu0
    %v541 = vpop.f32.mrf.mxu0
    %v542 = vpop.f32.mrf.mxu0
    %543 = vdwg.mxu0
    %544 = vst [vmem:[#allocation3 + $0x28] sm:$0xff] %v539
    %v545 = vpack.c.bf16 %v539, %v539
    %546 = vmatprep.subr.bf16.mxu0 0
    %547 = vmatpush1.bf16.msra.mxu0 %v327
    %548 = vmatprep.subr.bf16.mxu0 0
    %549 = vmatpush1.bf16.msra.mxu0 %v326
    %550 = vmatprep.subr.bf16.mxu0 0
    %551 = vmatpush1.bf16.msra.mxu0 %v325
    %552 = vmatprep.subr.bf16.mxu0 0
    %553 = vmatpush1.bf16.msra.mxu0 %v324
    %554 = vmatprep.subr.bf16.mxu0 0
    %555 = vmatpush1.bf16.msra.mxu0 %v323
    %556 = vmatprep.subr.bf16.mxu0 0
    %557 = vmatpush1.bf16.msra.mxu0 %v322
    %558 = vmatprep.subr.bf16.mxu0 0
    %559 = vmatpush1.bf16.msra.mxu0 %v321
    %560 = vmatprep.subr.bf16.mxu0 0
    %561 = vmatpush1.bf16.msra.mxu0 %v320
    %562 = vmatprep.subr.bf16.mxu0 0
    %563 = vmatpush2.bf16.msra.mxu0 0
    %564 = vmatprep.subr.bf16.mxu0 0
    %565 = vmatpush2.bf16.msra.mxu0 0
    %566 = vmatprep.subr.bf16.mxu0 0
    %567 = vmatpush2.bf16.msra.mxu0 0
    %568 = vmatprep.subr.bf16.mxu0 0
    %569 = vmatpush2.bf16.msra.mxu0 0
    %570 = vmatprep.subr.bf16.mxu0 0
    %571 = vmatpush2.bf16.msra.mxu0 0
    %572 = vmatprep.subr.bf16.mxu0 0
    %573 = vmatpush2.bf16.msra.mxu0 0
    %574 = vmatprep.subr.bf16.mxu0 0
    %575 = vmatpush2.bf16.msra.mxu0 0
    %576 = vmatprep.subr.bf16.mxu0 0
    %577 = vmatpush2.bf16.msra.mxu0 0
    %578 = vmatprep.mubr.bf16.mxu0 0
    %579 = vmatmul.mubr.bf16.gmra.mxu0 %v545
    %v580 = vpop.f32.mrf.mxu0
    %v581 = vadd.f32 %v266, %v580
    %v582 = vpop.f32.mrf.mxu0
    %v583 = vpop.f32.mrf.mxu0
    %v584 = vpop.f32.mrf.mxu0
    %585 = vdwg.mxu0
    %586 = vst [vmem:[#allocation3 + $0x30] sm:$0xff] %v581
    %v587 = vpack.c.bf16 %v581, %v581
    %588 = vmatprep.subr.bf16.mxu0 0
    %589 = vmatpush1.bf16.msra.mxu0 %v327
    %590 = vmatprep.subr.bf16.mxu0 0
    %591 = vmatpush1.bf16.msra.mxu0 %v326
    %592 = vmatprep.subr.bf16.mxu0 0
    %593 = vmatpush1.bf16.msra.mxu0 %v325
    %594 = vmatprep.subr.bf16.mxu0 0
    %595 = vmatpush1.bf16.msra.mxu0 %v324
    %596 = vmatprep.subr.bf16.mxu0 0
    %597 = vmatpush1.bf16.msra.mxu0 %v323
    %598 = vmatprep.subr.bf16.mxu0 0
    %599 = vmatpush1.bf16.msra.mxu0 %v322
    %600 = vmatprep.subr.bf16.mxu0 0
    %601 = vmatpush1.bf16.msra.mxu0 %v321
    %602 = vmatprep.subr.bf16.mxu0 0
    %603 = vmatpush1.bf16.msra.mxu0 %v320
    %604 = vmatprep.subr.bf16.mxu0 0
    %605 = vmatpush2.bf16.msra.mxu0 0
    %606 = vmatprep.subr.bf16.mxu0 0
    %607 = vmatpush2.bf16.msra.mxu0 0
    %608 = vmatprep.subr.bf16.mxu0 0
    %609 = vmatpush2.bf16.msra.mxu0 0
    %610 = vmatprep.subr.bf16.mxu0 0
    %611 = vmatpush2.bf16.msra.mxu0 0
    %612 = vmatprep.subr.bf16.mxu0 0
    %613 = vmatpush2.bf16.msra.mxu0 0
    %614 = vmatprep.subr.bf16.mxu0 0
    %615 = vmatpush2.bf16.msra.mxu0 0
    %616 = vmatprep.subr.bf16.mxu0 0
    %617 = vmatpush2.bf16.msra.mxu0 0
    %618 = vmatprep.subr.bf16.mxu0 0
    %619 = vmatpush2.bf16.msra.mxu0 0
    %620 = vmatprep.mubr.bf16.mxu0 0
    %621 = vmatmul.mubr.bf16.gmra.mxu0 %v587
    %v622 = vpop.f32.mrf.mxu0
    %v623 = vadd.f32 %v267, %v622
    %v624 = vpop.f32.mrf.mxu0
    %v625 = vpop.f32.mrf.mxu0
    %v626 = vpop.f32.mrf.mxu0
    %627 = vdwg.mxu0
    %628 = vst [vmem:[#allocation3 + $0x38] sm:$0xff] %v623
    %v629 = vpack.c.bf16 %v623, %v623
    %630 = vmatprep.subr.bf16.mxu0 0
    %631 = vmatpush1.bf16.msra.mxu0 %v327
    %632 = vmatprep.subr.bf16.mxu0 0
    %633 = vmatpush1.bf16.msra.mxu0 %v326
    %634 = vmatprep.subr.bf16.mxu0 0
    %635 = vmatpush1.bf16.msra.mxu0 %v325
    %636 = vmatprep.subr.bf16.mxu0 0
    %637 = vmatpush1.bf16.msra.mxu0 %v324
    %638 = vmatprep.subr.bf16.mxu0 0
    %639 = vmatpush1.bf16.msra.mxu0 %v323
    %640 = vmatprep.subr.bf16.mxu0 0
    %641 = vmatpush1.bf16.msra.mxu0 %v322
    %642 = vmatprep.subr.bf16.mxu0 0
    %643 = vmatpush1.bf16.msra.mxu0 %v321
    %644 = vmatprep.subr.bf16.mxu0 0
    %645 = vmatpush1.bf16.msra.mxu0 %v320
    %646 = vmatprep.subr.bf16.mxu0 0
    %647 = vmatpush2.bf16.msra.mxu0 0
    %648 = vmatprep.subr.bf16.mxu0 0
    %649 = vmatpush2.bf16.msra.mxu0 0
    %650 = vmatprep.subr.bf16.mxu0 0
    %651 = vmatpush2.bf16.msra.mxu0 0
    %652 = vmatprep.subr.bf16.mxu0 0
    %653 = vmatpush2.bf16.msra.mxu0 0
    %654 = vmatprep.subr.bf16.mxu0 0
    %655 = vmatpush2.bf16.msra.mxu0 0
    %656 = vmatprep.subr.bf16.mxu0 0
    %657 = vmatpush2.bf16.msra.mxu0 0
    %658 = vmatprep.subr.bf16.mxu0 0
    %659 = vmatpush2.bf16.msra.mxu0 0
    %660 = vmatprep.subr.bf16.mxu0 0
    %661 = vmatpush2.bf16.msra.mxu0 0
    %662 = vmatprep.mubr.bf16.mxu0 0
    %663 = vmatmul.mubr.bf16.gmra.mxu0 %v629
    %v664 = vpop.f32.mrf.mxu0
    %v665 = vadd.f32 %v268, %v664
    %v666 = vpop.f32.mrf.mxu0
    %v667 = vpop.f32.mrf.mxu0
    %v668 = vpop.f32.mrf.mxu0
    %669 = vdwg.mxu0
    %670 = vst [vmem:[#allocation2] sm:$0xff] %v665
    %671 = vst [vmem:[#allocation6] sm:$0xff] %v665
    %v672 = vld [vmem:[#allocation3] sm:$0xff]
    %v673 = vld [vmem:[#allocation3 + $0x8] sm:$0xff]
    %v674 = vld [vmem:[#allocation3 + $0x10] sm:$0xff]
    %v675 = vld [vmem:[#allocation3 + $0x18] sm:$0xff]
    %v676 = vld [vmem:[#allocation3 + $0x20] sm:$0xff]
    %v677 = vld [vmem:[#allocation3 + $0x28] sm:$0xff]
    %v678 = vld [vmem:[#allocation3 + $0x30] sm:$0xff]
    %v679 = vld [vmem:[#allocation3 + $0x38] sm:$0xff]
    %v680 = vpack.c.bf16 %v673, %v672
    %v681 = vpack.c.bf16 %v675, %v674
    %v682 = vpack.c.bf16 %v677, %v676
    %v683 = vpack.c.bf16 %v679, %v678
    %v684 = vld [vmem:[%s5] sm:$0xff]
    %v685 = vld [vmem:[%s5 + $0x8] sm:$0xff]
    %v686 = vld [vmem:[%s5 + $0x10] sm:$0xff]
    %v687 = vld [vmem:[%s5 + $0x18] sm:$0xff]
    %v688 = vld [vmem:[%s5 + $0x20] sm:$0xff]
    %v689 = vld [vmem:[%s5 + $0x28] sm:$0xff]
    %v690 = vld [vmem:[%s5 + $0x30] sm:$0xff]
    %v691 = vld [vmem:[%s5 + $0x38] sm:$0xff]
    %v692 = vld [vmem:[%s5 + $0x40] sm:$0xff]
    %v693 = vld [vmem:[%s5 + $0x48] sm:$0xff]
    %v694 = vld [vmem:[%s5 + $0x50] sm:$0xff]
    %v695 = vld [vmem:[%s5 + $0x58] sm:$0xff]
    %v696 = vld [vmem:[%s5 + $0x60] sm:$0xff]
    %v697 = vld [vmem:[%s5 + $0x68] sm:$0xff]
    %v698 = vld [vmem:[%s5 + $0x70] sm:$0xff]
    %v699 = vld [vmem:[%s5 + $0x78] sm:$0xff]
    %v716 = vunpack.c.l.b16 %v684
    %v717 = vunpack.c.h.b16 %v684
    %v718 = vunpack.c.l.b16 %v685
    %v719 = vunpack.c.h.b16 %v685
    %v720 = vunpack.c.l.b16 %v686
    %v721 = vunpack.c.h.b16 %v686
    %v722 = vunpack.c.l.b16 %v687
    %v723 = vunpack.c.h.b16 %v687
    %v724 = vunpack.c.l.b16 %v688
    %v725 = vunpack.c.h.b16 %v688
    %v726 = vunpack.c.l.b16 %v689
    %v727 = vunpack.c.h.b16 %v689
    %v728 = vunpack.c.l.b16 %v690
    %v729 = vunpack.c.h.b16 %v690
    %v730 = vunpack.c.l.b16 %v691
    %v731 = vunpack.c.h.b16 %v691
    %v732 = vunpack.c.l.b16 %v692
    %v733 = vunpack.c.h.b16 %v692
    %v734 = vunpack.c.l.b16 %v693
    %v735 = vunpack.c.h.b16 %v693
    %v736 = vunpack.c.l.b16 %v694
    %v737 = vunpack.c.h.b16 %v694
    %v738 = vunpack.c.l.b16 %v695
    %v739 = vunpack.c.h.b16 %v695
    %v740 = vunpack.c.l.b16 %v696
    %v741 = vunpack.c.h.b16 %v696
    %v742 = vunpack.c.l.b16 %v697
    %v743 = vunpack.c.h.b16 %v697
    %v744 = vunpack.c.l.b16 %v698
    %v745 = vunpack.c.h.b16 %v698
    %v746 = vunpack.c.l.b16 %v699
    %v747 = vunpack.c.h.b16 %v699
    %v748 = vpack.c.b16 %v718, %v716
    %v749 = vpack.c.b16 %v719, %v717
    %v750 = vpack.c.b16 %v722, %v720
    %v751 = vpack.c.b16 %v723, %v721
    %v752 = vpack.c.b16 %v726, %v724
    %v753 = vpack.c.b16 %v727, %v725
    %v754 = vpack.c.b16 %v730, %v728
    %v755 = vpack.c.b16 %v731, %v729
    %v756 = vpack.c.b16 %v734, %v732
    %v757 = vpack.c.b16 %v735, %v733
    %v758 = vpack.c.b16 %v738, %v736
    %v759 = vpack.c.b16 %v739, %v737
    %v760 = vpack.c.b16 %v742, %v740
    %v761 = vpack.c.b16 %v743, %v741
    %v762 = vpack.c.b16 %v746, %v744
    %v763 = vpack.c.b16 %v747, %v745
    %780 = vmatprep.subr.bf16.mxu0 %v763
    %781 = vmatpush1.bf16.msra.mxu0 %v762
    %782 = vmatprep.subr.bf16.mxu0 %v761
    %783 = vmatpush1.bf16.msra.mxu0 %v760
    %784 = vmatprep.subr.bf16.mxu0 %v759
    %785 = vmatpush1.bf16.msra.mxu0 %v758
    %786 = vmatprep.subr.bf16.mxu0 %v757
    %787 = vmatpush1.bf16.msra.mxu0 %v756
    %788 = vmatprep.subr.bf16.mxu0 %v755
    %789 = vmatpush1.bf16.msra.mxu0 %v754
    %790 = vmatprep.subr.bf16.mxu0 %v753
    %791 = vmatpush1.bf16.msra.mxu0 %v752
    %792 = vmatprep.subr.bf16.mxu0 %v751
    %793 = vmatpush1.bf16.msra.mxu0 %v750
    %794 = vmatprep.subr.bf16.mxu0 %v749
    %795 = vmatpush1.bf16.msra.mxu0 %v748
    %796 = vmatprep.subr.bf16.mxu0 0
    %797 = vmatpush2.bf16.msra.mxu0 0
    %798 = vmatprep.subr.bf16.mxu0 0
    %799 = vmatpush2.bf16.msra.mxu0 0
    %800 = vmatprep.subr.bf16.mxu0 0
    %801 = vmatpush2.bf16.msra.mxu0 0
    %802 = vmatprep.subr.bf16.mxu0 0
    %803 = vmatpush2.bf16.msra.mxu0 0
    %804 = vmatprep.subr.bf16.mxu0 0
    %805 = vmatpush2.bf16.msra.mxu0 0
    %806 = vmatprep.subr.bf16.mxu0 0
    %807 = vmatpush2.bf16.msra.mxu0 0
    %808 = vmatprep.subr.bf16.mxu0 0
    %809 = vmatpush2.bf16.msra.mxu0 0
    %810 = vmatprep.subr.bf16.mxu0 0
    %811 = vmatpush2.bf16.msra.mxu0 0
    %812 = vmatprep.mubr.bf16.mxu0 0
    %813 = vmatmul.mubr.bf16.gmra.mxu0 %v680
    %v814 = vpop.f32.mrf.mxu0
    %v815 = vadd.f32 %v151, %v814
    %v816 = vpop.f32.mrf.mxu0
    %v817 = vadd.f32 %v153, %v816
    %v818 = vpop.f32.mrf.mxu0
    %v819 = vadd.f32 %v155, %v818
    %v820 = vpop.f32.mrf.mxu0
    %v821 = vadd.f32 %v157, %v820
    %822 = vmatprep.mubr.bf16.mxu0 0
    %823 = vmatmul.mubr.bf16.gmra.mxu0 %v681
    %v824 = vpop.f32.mrf.mxu0
    %v825 = vadd.f32 %v161, %v824
    %v826 = vpop.f32.mrf.mxu0
    %v827 = vadd.f32 %v163, %v826
    %v828 = vpop.f32.mrf.mxu0
    %v829 = vadd.f32 %v165, %v828
    %v830 = vpop.f32.mrf.mxu0
    %v831 = vadd.f32 %v167, %v830
    %832 = vmatprep.mubr.bf16.mxu0 0
    %833 = vmatmul.mubr.bf16.gmra.mxu0 %v682
    %v834 = vpop.f32.mrf.mxu0
    %v835 = vadd.f32 %v171, %v834
    %v836 = vpop.f32.mrf.mxu0
    %v837 = vadd.f32 %v173, %v836
    %v838 = vpop.f32.mrf.mxu0
    %v839 = vadd.f32 %v175, %v838
    %v840 = vpop.f32.mrf.mxu0
    %v841 = vadd.f32 %v177, %v840
    %842 = vmatprep.mubr.bf16.mxu0 0
    %843 = vmatmul.mubr.bf16.gmra.mxu0 %v683
    %v844 = vpop.f32.mrf.mxu0
    %v845 = vadd.f32 %v181, %v844
    %v846 = vpop.f32.mrf.mxu0
    %v847 = vadd.f32 %v183, %v846
    %v848 = vpop.f32.mrf.mxu0
    %v849 = vadd.f32 %v185, %v848
    %v850 = vpop.f32.mrf.mxu0
    %v851 = vadd.f32 %v187, %v850
    %852 = vdwg.mxu0
    %v853 = vld [vmem:[%s6] sm:$0x3]
    %v855 = vlaneseq
    %v856 = vshrl.u32 %v855, 7
    %v857 = vsub.s32 0, %v856
    %v858 = vrot.slane %v853, %v857
    %v859 = vlaneseq
    %v860 = vshrl.u32 %v859, 7
    %v861 = vsub.s32 1, %v860
    %v862 = vrot.slane %v853, %v861
    %v865 = vadd.f32 %v815, %v858
    %v866 = vadd.f32 %v817, %v862
    %v867 = vadd.f32 %v819, %v858
    %v868 = vadd.f32 %v821, %v862
    %v869 = vadd.f32 %v825, %v858
    %v870 = vadd.f32 %v827, %v862
    %v871 = vadd.f32 %v829, %v858
    %v872 = vadd.f32 %v831, %v862
    %v873 = vadd.f32 %v835, %v858
    %v874 = vadd.f32 %v837, %v862
    %v875 = vadd.f32 %v839, %v858
    %v876 = vadd.f32 %v841, %v862
    %v877 = vadd.f32 %v845, %v858
    %v878 = vadd.f32 %v847, %v862
    %v879 = vadd.f32 %v849, %v858
    %v880 = vadd.f32 %v851, %v862
    %v881 = vmax.f32 %v865, 0.0
    %v882 = vmax.f32 %v866, 0.0
    %v883 = vmax.f32 %v867, 0.0
    %v884 = vmax.f32 %v868, 0.0
    %v885 = vmax.f32 %v869, 0.0
    %v886 = vmax.f32 %v870, 0.0
    %v887 = vmax.f32 %v871, 0.0
    %v888 = vmax.f32 %v872, 0.0
    %v889 = vmax.f32 %v873, 0.0
    %v890 = vmax.f32 %v874, 0.0
    %v891 = vmax.f32 %v875, 0.0
    %v892 = vmax.f32 %v876, 0.0
    %v893 = vmax.f32 %v877, 0.0
    %v894 = vmax.f32 %v878, 0.0
    %v895 = vmax.f32 %v879, 0.0
    %v896 = vmax.f32 %v880, 0.0
    %v897 = vpack.c.bf16 %v883, %v881
    %v898 = vpack.c.bf16 %v884, %v882
    %v899 = vpack.c.bf16 %v887, %v885
    %v900 = vpack.c.bf16 %v888, %v886
    %v901 = vpack.c.bf16 %v891, %v889
    %v902 = vpack.c.bf16 %v892, %v890
    %v903 = vpack.c.bf16 %v895, %v893
    %v904 = vpack.c.bf16 %v896, %v894
    %v905 = vld [vmem:[%s7] sm:$0xff]
    %v906 = vld [vmem:[%s7 + $0x8] sm:$0xff]
    %v907 = vld [vmem:[%s7 + $0x10] sm:$0xff]
    %v908 = vld [vmem:[%s7 + $0x18] sm:$0xff]
    %v909 = vld [vmem:[%s7 + $0x20] sm:$0xff]
    %v910 = vld [vmem:[%s7 + $0x28] sm:$0xff]
    %v911 = vld [vmem:[%s7 + $0x30] sm:$0xff]
    %v912 = vld [vmem:[%s7 + $0x38] sm:$0xff]
    %v913 = vld [vmem:[%s7 + $0x40] sm:$0xff]
    %v914 = vld [vmem:[%s7 + $0x48] sm:$0xff]
    %v915 = vld [vmem:[%s7 + $0x50] sm:$0xff]
    %v916 = vld [vmem:[%s7 + $0x58] sm:$0xff]
    %v917 = vld [vmem:[%s7 + $0x60] sm:$0xff]
    %v918 = vld [vmem:[%s7 + $0x68] sm:$0xff]
    %v919 = vld [vmem:[%s7 + $0x70] sm:$0xff]
    %v920 = vld [vmem:[%s7 + $0x78] sm:$0xff]
    %v921 = vld [vmem:[%s7 + $0x80] sm:$0xff]
    %v922 = vld [vmem:[%s7 + $0x88] sm:$0xff]
    %v923 = vld [vmem:[%s7 + $0x90] sm:$0xff]
    %v924 = vld [vmem:[%s7 + $0x98] sm:$0xff]
    %v925 = vld [vmem:[%s7 + $0xa0] sm:$0xff]
    %v926 = vld [vmem:[%s7 + $0xa8] sm:$0xff]
    %v927 = vld [vmem:[%s7 + $0xb0] sm:$0xff]
    %v928 = vld [vmem:[%s7 + $0xb8] sm:$0xff]
    %v929 = vld [vmem:[%s7 + $0xc0] sm:$0xff]
    %v930 = vld [vmem:[%s7 + $0xc8] sm:$0xff]
    %v931 = vld [vmem:[%s7 + $0xd0] sm:$0xff]
    %v932 = vld [vmem:[%s7 + $0xd8] sm:$0xff]
    %v933 = vld [vmem:[%s7 + $0xe0] sm:$0xff]
    %v934 = vld [vmem:[%s7 + $0xe8] sm:$0xff]
    %v935 = vld [vmem:[%s7 + $0xf0] sm:$0xff]
    %v936 = vld [vmem:[%s7 + $0xf8] sm:$0xff]
    %v937 = vld [vmem:[%s8] sm:$0x3]
    %v939 = vlaneseq
    %v940 = vshrl.u32 %v939, 7
    %v941 = vsub.s32 0, %v940
    %v942 = vrot.slane %v937, %v941
    %v943 = vlaneseq
    %v944 = vshrl.u32 %v943, 7
    %v945 = vsub.s32 1, %v944
    %v946 = vrot.slane %v937, %v945
    %v981 = vunpack.c.l.b16 %v905
    %v982 = vunpack.c.h.b16 %v905
    %v983 = vunpack.c.l.b16 %v906
    %v984 = vunpack.c.h.b16 %v906
    %v985 = vunpack.c.l.b16 %v907
    %v986 = vunpack.c.h.b16 %v907
    %v987 = vunpack.c.l.b16 %v908
    %v988 = vunpack.c.h.b16 %v908
    %v989 = vunpack.c.l.b16 %v909
    %v990 = vunpack.c.h.b16 %v909
    %v991 = vunpack.c.l.b16 %v910
    %v992 = vunpack.c.h.b16 %v910
    %v993 = vunpack.c.l.b16 %v911
    %v994 = vunpack.c.h.b16 %v911
    %v995 = vunpack.c.l.b16 %v912
    %v996 = vunpack.c.h.b16 %v912
    %v997 = vunpack.c.l.b16 %v913
    %v998 = vunpack.c.h.b16 %v913
    %v999 = vunpack.c.l.b16 %v914
    %v1000 = vunpack.c.h.b16 %v914
    %v1001 = vunpack.c.l.b16 %v915
    %v1002 = vunpack.c.h.b16 %v915
    %v1003 = vunpack.c.l.b16 %v916
    %v1004 = vunpack.c.h.b16 %v916
    %v1005 = vunpack.c.l.b16 %v917
    %v1006 = vunpack.c.h.b16 %v917
    %v1007 = vunpack.c.l.b16 %v918
    %v1008 = vunpack.c.h.b16 %v918
    %v1009 = vunpack.c.l.b16 %v919
    %v1010 = vunpack.c.h.b16 %v919
    %v1011 = vunpack.c.l.b16 %v920
    %v1012 = vunpack.c.h.b16 %v920
    %v1013 = vunpack.c.l.b16 %v921
    %v1014 = vunpack.c.h.b16 %v921
    %v1015 = vunpack.c.l.b16 %v922
    %v1016 = vunpack.c.h.b16 %v922
    %v1017 = vunpack.c.l.b16 %v923
    %v1018 = vunpack.c.h.b16 %v923
    %v1019 = vunpack.c.l.b16 %v924
    %v1020 = vunpack.c.h.b16 %v924
    %v1021 = vunpack.c.l.b16 %v925
    %v1022 = vunpack.c.h.b16 %v925
    %v1023 = vunpack.c.l.b16 %v926
    %v1024 = vunpack.c.h.b16 %v926
    %v1025 = vunpack.c.l.b16 %v927
    %v1026 = vunpack.c.h.b16 %v927
    %v1027 = vunpack.c.l.b16 %v928
    %v1028 = vunpack.c.h.b16 %v928
    %v1029 = vunpack.c.l.b16 %v929
    %v1030 = vunpack.c.h.b16 %v929
    %v1031 = vunpack.c.l.b16 %v930
    %v1032 = vunpack.c.h.b16 %v930
    %v1033 = vunpack.c.l.b16 %v931
    %v1034 = vunpack.c.h.b16 %v931
    %v1035 = vunpack.c.l.b16 %v932
    %v1036 = vunpack.c.h.b16 %v932
    %v1037 = vunpack.c.l.b16 %v933
    %v1038 = vunpack.c.h.b16 %v933
    %v1039 = vunpack.c.l.b16 %v934
    %v1040 = vunpack.c.h.b16 %v934
    %v1041 = vunpack.c.l.b16 %v935
    %v1042 = vunpack.c.h.b16 %v935
    %v1043 = vunpack.c.l.b16 %v936
    %v1044 = vunpack.c.h.b16 %v936
    %v1045 = vpack.c.b16 %v983, %v981
    %v1046 = vpack.c.b16 %v984, %v982
    %v1047 = vpack.c.b16 %v987, %v985
    %v1048 = vpack.c.b16 %v988, %v986
    %v1049 = vpack.c.b16 %v991, %v989
    %v1050 = vpack.c.b16 %v992, %v990
    %v1051 = vpack.c.b16 %v995, %v993
    %v1052 = vpack.c.b16 %v996, %v994
    %v1053 = vpack.c.b16 %v999, %v997
    %v1054 = vpack.c.b16 %v1000, %v998
    %v1055 = vpack.c.b16 %v1003, %v1001
    %v1056 = vpack.c.b16 %v1004, %v1002
    %v1057 = vpack.c.b16 %v1007, %v1005
    %v1058 = vpack.c.b16 %v1008, %v1006
    %v1059 = vpack.c.b16 %v1011, %v1009
    %v1060 = vpack.c.b16 %v1012, %v1010
    %v1061 = vpack.c.b16 %v1015, %v1013
    %v1062 = vpack.c.b16 %v1016, %v1014
    %v1063 = vpack.c.b16 %v1019, %v1017
    %v1064 = vpack.c.b16 %v1020, %v1018
    %v1065 = vpack.c.b16 %v1023, %v1021
    %v1066 = vpack.c.b16 %v1024, %v1022
    %v1067 = vpack.c.b16 %v1027, %v1025
    %v1068 = vpack.c.b16 %v1028, %v1026
    %v1069 = vpack.c.b16 %v1031, %v1029
    %v1070 = vpack.c.b16 %v1032, %v1030
    %v1071 = vpack.c.b16 %v1035, %v1033
    %v1072 = vpack.c.b16 %v1036, %v1034
    %v1073 = vpack.c.b16 %v1039, %v1037
    %v1074 = vpack.c.b16 %v1040, %v1038
    %v1075 = vpack.c.b16 %v1043, %v1041
    %v1076 = vpack.c.b16 %v1044, %v1042
    %1109 = vmatprep.subr.bf16.mxu0 %v1060
    %1110 = vmatpush1.bf16.msra.mxu0 %v1059
    %1111 = vmatprep.subr.bf16.mxu0 %v1058
    %1112 = vmatpush1.bf16.msra.mxu0 %v1057
    %1113 = vmatprep.subr.bf16.mxu0 %v1056
    %1114 = vmatpush1.bf16.msra.mxu0 %v1055
    %1115 = vmatprep.subr.bf16.mxu0 %v1054
    %1116 = vmatpush1.bf16.msra.mxu0 %v1053
    %1117 = vmatprep.subr.bf16.mxu0 %v1052
    %1118 = vmatpush1.bf16.msra.mxu0 %v1051
    %1119 = vmatprep.subr.bf16.mxu0 %v1050
    %1120 = vmatpush1.bf16.msra.mxu0 %v1049
    %1121 = vmatprep.subr.bf16.mxu0 %v1048
    %1122 = vmatpush1.bf16.msra.mxu0 %v1047
    %1123 = vmatprep.subr.bf16.mxu0 %v1046
    %1124 = vmatpush1.bf16.msra.mxu0 %v1045
    %1125 = vmatprep.subr.bf16.mxu0 %v1076
    %1126 = vmatpush2.bf16.msra.mxu0 %v1075
    %1127 = vmatprep.subr.bf16.mxu0 %v1074
    %1128 = vmatpush2.bf16.msra.mxu0 %v1073
    %1129 = vmatprep.subr.bf16.mxu0 %v1072
    %1130 = vmatpush2.bf16.msra.mxu0 %v1071
    %1131 = vmatprep.subr.bf16.mxu0 %v1070
    %1132 = vmatpush2.bf16.msra.mxu0 %v1069
    %1133 = vmatprep.subr.bf16.mxu0 %v1068
    %1134 = vmatpush2.bf16.msra.mxu0 %v1067
    %1135 = vmatprep.subr.bf16.mxu0 %v1066
    %1136 = vmatpush2.bf16.msra.mxu0 %v1065
    %1137 = vmatprep.subr.bf16.mxu0 %v1064
    %1138 = vmatpush2.bf16.msra.mxu0 %v1063
    %1139 = vmatprep.subr.bf16.mxu0 %v1062
    %1140 = vmatpush2.bf16.msra.mxu0 %v1061
    %1141 = vmatprep.mubr.bf16.mxu0 %v898
    %1142 = vmatmul.mubr.bf16.gmra.mxu0 %v897
    %v1143 = vpop.f32.mrf.mxu0
    %v1144 = vadd.f32 %v942, %v1143
    %v1145 = vpop.f32.mrf.mxu0
    %v1146 = vadd.f32 %v946, %v1145
    %v1147 = vpop.f32.mrf.mxu0
    %v1148 = vadd.f32 %v942, %v1147
    %v1149 = vpop.f32.mrf.mxu0
    %v1150 = vadd.f32 %v946, %v1149
    %1151 = vmatprep.mubr.bf16.mxu0 %v900
    %1152 = vmatmul.mubr.bf16.gmra.mxu0 %v899
    %v1153 = vpop.f32.mrf.mxu0
    %v1154 = vadd.f32 %v942, %v1153
    %v1155 = vpop.f32.mrf.mxu0
    %v1156 = vadd.f32 %v946, %v1155
    %v1157 = vpop.f32.mrf.mxu0
    %v1158 = vadd.f32 %v942, %v1157
    %v1159 = vpop.f32.mrf.mxu0
    %v1160 = vadd.f32 %v946, %v1159
    %1161 = vmatprep.mubr.bf16.mxu0 %v902
    %1162 = vmatmul.mubr.bf16.gmra.mxu0 %v901
    %v1163 = vpop.f32.mrf.mxu0
    %v1164 = vadd.f32 %v942, %v1163
    %v1165 = vpop.f32.mrf.mxu0
    %v1166 = vadd.f32 %v946, %v1165
    %v1167 = vpop.f32.mrf.mxu0
    %v1168 = vadd.f32 %v942, %v1167
    %v1169 = vpop.f32.mrf.mxu0
    %v1170 = vadd.f32 %v946, %v1169
    %1171 = vmatprep.mubr.bf16.mxu0 %v904
    %1172 = vmatmul.mubr.bf16.gmra.mxu0 %v903
    %v1173 = vpop.f32.mrf.mxu0
    %v1174 = vadd.f32 %v942, %v1173
    %v1175 = vpop.f32.mrf.mxu0
    %v1176 = vadd.f32 %v946, %v1175
    %v1177 = vpop.f32.mrf.mxu0
    %v1178 = vadd.f32 %v942, %v1177
    %v1179 = vpop.f32.mrf.mxu0
    %v1180 = vadd.f32 %v946, %v1179
    %1181 = vdwg.mxu0
    %v1182 = vmax.f32 %v1144, 0.0
    %v1183 = vmax.f32 %v1146, 0.0
    %v1184 = vmax.f32 %v1148, 0.0
    %v1185 = vmax.f32 %v1150, 0.0
    %v1186 = vmax.f32 %v1154, 0.0
    %v1187 = vmax.f32 %v1156, 0.0
    %v1188 = vmax.f32 %v1158, 0.0
    %v1189 = vmax.f32 %v1160, 0.0
    %v1190 = vmax.f32 %v1164, 0.0
    %v1191 = vmax.f32 %v1166, 0.0
    %v1192 = vmax.f32 %v1168, 0.0
    %v1193 = vmax.f32 %v1170, 0.0
    %v1194 = vmax.f32 %v1174, 0.0
    %v1195 = vmax.f32 %v1176, 0.0
    %v1196 = vmax.f32 %v1178, 0.0
    %v1197 = vmax.f32 %v1180, 0.0
    %v1198 = vpack.c.bf16 %v1184, %v1182
    %v1199 = vpack.c.bf16 %v1185, %v1183
    %v1200 = vpack.c.bf16 %v1188, %v1186
    %v1201 = vpack.c.bf16 %v1189, %v1187
    %v1202 = vpack.c.bf16 %v1192, %v1190
    %v1203 = vpack.c.bf16 %v1193, %v1191
    %v1204 = vpack.c.bf16 %v1196, %v1194
    %v1205 = vpack.c.bf16 %v1197, %v1195
    %v1206 = vld [vmem:[%s9] sm:$0xf]
    %v1207 = vld [vmem:[%s9 + $0x4] sm:$0xf]
    %v1208 = vld [vmem:[%s9 + $0x8] sm:$0xf]
    %v1209 = vld [vmem:[%s9 + $0xc] sm:$0xf]
    %v1210 = vld [vmem:[%s9 + $0x10] sm:$0xf]
    %v1211 = vld [vmem:[%s9 + $0x14] sm:$0xf]
    %v1212 = vld [vmem:[%s9 + $0x18] sm:$0xf]
    %v1213 = vld [vmem:[%s9 + $0x1c] sm:$0xf]
    %v1214 = vld [vmem:[%s9 + $0x20] sm:$0xf]
    %v1215 = vld [vmem:[%s9 + $0x24] sm:$0xf]
    %v1216 = vld [vmem:[%s9 + $0x28] sm:$0xf]
    %v1217 = vld [vmem:[%s9 + $0x2c] sm:$0xf]
    %v1218 = vld [vmem:[%s9 + $0x30] sm:$0xf]
    %v1219 = vld [vmem:[%s9 + $0x34] sm:$0xf]
    %v1220 = vld [vmem:[%s9 + $0x38] sm:$0xf]
    %v1221 = vld [vmem:[%s9 + $0x3c] sm:$0xf]
    %v1222 = vld [vmem:[%s9 + $0x40] sm:$0xf]
    %v1223 = vld [vmem:[%s9 + $0x44] sm:$0xf]
    %v1224 = vld [vmem:[%s9 + $0x48] sm:$0xf]
    %v1225 = vld [vmem:[%s9 + $0x4c] sm:$0xf]
    %v1226 = vld [vmem:[%s9 + $0x50] sm:$0xf]
    %v1227 = vld [vmem:[%s9 + $0x54] sm:$0xf]
    %v1228 = vld [vmem:[%s9 + $0x58] sm:$0xf]
    %v1229 = vld [vmem:[%s9 + $0x5c] sm:$0xf]
    %v1230 = vld [vmem:[%s9 + $0x60] sm:$0xf]
    %v1231 = vld [vmem:[%s9 + $0x64] sm:$0xf]
    %v1232 = vld [vmem:[%s9 + $0x68] sm:$0xf]
    %v1233 = vld [vmem:[%s9 + $0x6c] sm:$0xf]
    %v1234 = vld [vmem:[%s9 + $0x70] sm:$0xf]
    %v1235 = vld [vmem:[%s9 + $0x74] sm:$0xf]
    %v1236 = vld [vmem:[%s9 + $0x78] sm:$0xf]
    %v1237 = vld [vmem:[%s9 + $0x7c] sm:$0xf]
    %v1238 = vld [vmem:[%s10] sm:$0x1]
    %v1240 = vlaneseq
    %v1241 = vshrl.u32 %v1240, 7
    %v1242 = vsub.s32 0, %v1241
    %v1243 = vrot.slane %v1238, %v1242
    %v1277 = vunpack.c.l.b16 %v1206
    %v1278 = vunpack.c.l.b16 %v1207
    %v1279 = vunpack.c.l.b16 %v1208
    %v1280 = vunpack.c.l.b16 %v1209
    %v1281 = vunpack.c.l.b16 %v1210
    %v1282 = vunpack.c.l.b16 %v1211
    %v1283 = vunpack.c.l.b16 %v1212
    %v1284 = vunpack.c.l.b16 %v1213
    %v1285 = vunpack.c.l.b16 %v1214
    %v1286 = vunpack.c.l.b16 %v1215
    %v1287 = vunpack.c.l.b16 %v1216
    %v1288 = vunpack.c.l.b16 %v1217
    %v1289 = vunpack.c.l.b16 %v1218
    %v1290 = vunpack.c.l.b16 %v1219
    %v1291 = vunpack.c.l.b16 %v1220
    %v1292 = vunpack.c.l.b16 %v1221
    %v1293 = vunpack.c.l.b16 %v1222
    %v1294 = vunpack.c.l.b16 %v1223
    %v1295 = vunpack.c.l.b16 %v1224
    %v1296 = vunpack.c.l.b16 %v1225
    %v1297 = vunpack.c.l.b16 %v1226
    %v1298 = vunpack.c.l.b16 %v1227
    %v1299 = vunpack.c.l.b16 %v1228
    %v1300 = vunpack.c.l.b16 %v1229
    %v1301 = vunpack.c.l.b16 %v1230
    %v1302 = vunpack.c.l.b16 %v1231
    %v1303 = vunpack.c.l.b16 %v1232
    %v1304 = vunpack.c.l.b16 %v1233
    %v1305 = vunpack.c.l.b16 %v1234
    %v1306 = vunpack.c.l.b16 %v1235
    %v1307 = vunpack.c.l.b16 %v1236
    %v1308 = vunpack.c.l.b16 %v1237
    %v1309 = vpack.c.b16 %v1278, %v1277
    %v1310 = vpack.c.b16 %v1280, %v1279
    %v1311 = vpack.c.b16 %v1282, %v1281
    %v1312 = vpack.c.b16 %v1284, %v1283
    %v1313 = vpack.c.b16 %v1286, %v1285
    %v1314 = vpack.c.b16 %v1288, %v1287
    %v1315 = vpack.c.b16 %v1290, %v1289
    %v1316 = vpack.c.b16 %v1292, %v1291
    %v1317 = vpack.c.b16 %v1294, %v1293
    %v1318 = vpack.c.b16 %v1296, %v1295
    %v1319 = vpack.c.b16 %v1298, %v1297
    %v1320 = vpack.c.b16 %v1300, %v1299
    %v1321 = vpack.c.b16 %v1302, %v1301
    %v1322 = vpack.c.b16 %v1304, %v1303
    %v1323 = vpack.c.b16 %v1306, %v1305
    %v1324 = vpack.c.b16 %v1308, %v1307
    %1341 = vmatprep.subr.bf16.mxu0 0
    %1342 = vmatpush1.bf16.msra.mxu0 %v1316
    %1343 = vmatprep.subr.bf16.mxu0 0
    %1344 = vmatpush1.bf16.msra.mxu0 %v1315
    %1345 = vmatprep.subr.bf16.mxu0 0
    %1346 = vmatpush1.bf16.msra.mxu0 %v1314
    %1347 = vmatprep.subr.bf16.mxu0 0
    %1348 = vmatpush1.bf16.msra.mxu0 %v1313
    %1349 = vmatprep.subr.bf16.mxu0 0
    %1350 = vmatpush1.bf16.msra.mxu0 %v1312
    %1351 = vmatprep.subr.bf16.mxu0 0
    %1352 = vmatpush1.bf16.msra.mxu0 %v1311
    %1353 = vmatprep.subr.bf16.mxu0 0
    %1354 = vmatpush1.bf16.msra.mxu0 %v1310
    %1355 = vmatprep.subr.bf16.mxu0 0
    %1356 = vmatpush1.bf16.msra.mxu0 %v1309
    %1357 = vmatprep.subr.bf16.mxu0 0
    %1358 = vmatpush2.bf16.msra.mxu0 %v1324
    %1359 = vmatprep.subr.bf16.mxu0 0
    %1360 = vmatpush2.bf16.msra.mxu0 %v1323
    %1361 = vmatprep.subr.bf16.mxu0 0
    %1362 = vmatpush2.bf16.msra.mxu0 %v1322
    %1363 = vmatprep.subr.bf16.mxu0 0
    %1364 = vmatpush2.bf16.msra.mxu0 %v1321
    %1365 = vmatprep.subr.bf16.mxu0 0
    %1366 = vmatpush2.bf16.msra.mxu0 %v1320
    %1367 = vmatprep.subr.bf16.mxu0 0
    %1368 = vmatpush2.bf16.msra.mxu0 %v1319
    %1369 = vmatprep.subr.bf16.mxu0 0
    %1370 = vmatpush2.bf16.msra.mxu0 %v1318
    %1371 = vmatprep.subr.bf16.mxu0 0
    %1372 = vmatpush2.bf16.msra.mxu0 %v1317
    %1373 = vmatprep.mubr.bf16.mxu0 %v1199
    %1374 = vmatmul.mubr.bf16.gmra.mxu0 %v1198
    %v1375 = vpop.f32.mrf.mxu0
    %v1376 = vadd.f32 %v1243, %v1375
    %v1377 = vpop.f32.mrf.mxu0
    %v1378 = vpop.f32.mrf.mxu0
    %v1379 = vadd.f32 %v1243, %v1378
    %v1380 = vpop.f32.mrf.mxu0
    %1381 = vmatprep.mubr.bf16.mxu0 %v1201
    %1382 = vmatmul.mubr.bf16.gmra.mxu0 %v1200
    %v1383 = vpop.f32.mrf.mxu0
    %v1384 = vadd.f32 %v1243, %v1383
    %v1385 = vpop.f32.mrf.mxu0
    %v1386 = vpop.f32.mrf.mxu0
    %v1387 = vadd.f32 %v1243, %v1386
    %v1388 = vpop.f32.mrf.mxu0
    %1389 = vmatprep.mubr.bf16.mxu0 %v1203
    %1390 = vmatmul.mubr.bf16.gmra.mxu0 %v1202
    %v1391 = vpop.f32.mrf.mxu0
    %v1392 = vadd.f32 %v1243, %v1391
    %v1393 = vpop.f32.mrf.mxu0
    %v1394 = vpop.f32.mrf.mxu0
    %v1395 = vadd.f32 %v1243, %v1394
    %v1396 = vpop.f32.mrf.mxu0
    %1397 = vmatprep.mubr.bf16.mxu0 %v1205
    %1398 = vmatmul.mubr.bf16.gmra.mxu0 %v1204
    %v1399 = vpop.f32.mrf.mxu0
    %v1400 = vadd.f32 %v1243, %v1399
    %v1401 = vpop.f32.mrf.mxu0
    %v1402 = vpop.f32.mrf.mxu0
    %v1403 = vadd.f32 %v1243, %v1402
    %v1404 = vpop.f32.mrf.mxu0
    %1405 = vdwg.mxu0
    %v1406 = vmax.f32 %v1376, 0.0
    %v1407 = vmax.f32 %v1379, 0.0
    %v1408 = vmax.f32 %v1384, 0.0
    %v1409 = vmax.f32 %v1387, 0.0
    %v1410 = vmax.f32 %v1392, 0.0
    %v1411 = vmax.f32 %v1395, 0.0
    %v1412 = vmax.f32 %v1400, 0.0
    %v1413 = vmax.f32 %v1403, 0.0
    %v1414 = vpack.c.bf16 %v1407, %v1406
    %v1415 = vpack.c.bf16 %v1409, %v1408
    %v1416 = vpack.c.bf16 %v1411, %v1410
    %v1417 = vpack.c.bf16 %v1413, %v1412
    %v1418 = vld [vmem:[%s11] sm:$0xf]
    %v1419 = vld [vmem:[%s11 + $0x4] sm:$0xf]
    %v1420 = vld [vmem:[%s11 + $0x8] sm:$0xf]
    %v1421 = vld [vmem:[%s11 + $0xc] sm:$0xf]
    %v1422 = vld [vmem:[%s11 + $0x10] sm:$0xf]
    %v1423 = vld [vmem:[%s11 + $0x14] sm:$0xf]
    %v1424 = vld [vmem:[%s11 + $0x18] sm:$0xf]
    %v1425 = vld [vmem:[%s11 + $0x1c] sm:$0xf]
    %v1426 = vld [vmem:[%s11 + $0x20] sm:$0xf]
    %v1427 = vld [vmem:[%s11 + $0x24] sm:$0xf]
    %v1428 = vld [vmem:[%s11 + $0x28] sm:$0xf]
    %v1429 = vld [vmem:[%s11 + $0x2c] sm:$0xf]
    %v1430 = vld [vmem:[%s11 + $0x30] sm:$0xf]
    %v1431 = vld [vmem:[%s11 + $0x34] sm:$0xf]
    %v1432 = vld [vmem:[%s11 + $0x38] sm:$0xf]
    %v1433 = vld [vmem:[%s11 + $0x3c] sm:$0xf]
    %v1434 = vld [vmem:[%s12] sm:$0x1]
    %v1436 = vlaneseq
    %v1437 = vshrl.u32 %v1436, 7
    %v1438 = vsub.s32 0, %v1437
    %v1439 = vrot.slane %v1434, %v1438
    %v1457 = vunpack.c.l.b16 %v1418
    %v1458 = vunpack.c.l.b16 %v1419
    %v1459 = vunpack.c.l.b16 %v1420
    %v1460 = vunpack.c.l.b16 %v1421
    %v1461 = vunpack.c.l.b16 %v1422
    %v1462 = vunpack.c.l.b16 %v1423
    %v1463 = vunpack.c.l.b16 %v1424
    %v1464 = vunpack.c.l.b16 %v1425
    %v1465 = vunpack.c.l.b16 %v1426
    %v1466 = vunpack.c.l.b16 %v1427
    %v1467 = vunpack.c.l.b16 %v1428
    %v1468 = vunpack.c.l.b16 %v1429
    %v1469 = vunpack.c.l.b16 %v1430
    %v1470 = vunpack.c.l.b16 %v1431
    %v1471 = vunpack.c.l.b16 %v1432
    %v1472 = vunpack.c.l.b16 %v1433
    %v1473 = vpack.c.b16 %v1458, %v1457
    %v1474 = vpack.c.b16 %v1460, %v1459
    %v1475 = vpack.c.b16 %v1462, %v1461
    %v1476 = vpack.c.b16 %v1464, %v1463
    %v1477 = vpack.c.b16 %v1466, %v1465
    %v1478 = vpack.c.b16 %v1468, %v1467
    %v1479 = vpack.c.b16 %v1470, %v1469
    %v1480 = vpack.c.b16 %v1472, %v1471
    %1489 = vmatprep.subr.bf16.mxu0 0
    %1490 = vmatpush1.bf16.msra.mxu0 %v1480
    %1491 = vmatprep.subr.bf16.mxu0 0
    %1492 = vmatpush1.bf16.msra.mxu0 %v1479
    %1493 = vmatprep.subr.bf16.mxu0 0
    %1494 = vmatpush1.bf16.msra.mxu0 %v1478
    %1495 = vmatprep.subr.bf16.mxu0 0
    %1496 = vmatpush1.bf16.msra.mxu0 %v1477
    %1497 = vmatprep.subr.bf16.mxu0 0
    %1498 = vmatpush1.bf16.msra.mxu0 %v1476
    %1499 = vmatprep.subr.bf16.mxu0 0
    %1500 = vmatpush1.bf16.msra.mxu0 %v1475
    %1501 = vmatprep.subr.bf16.mxu0 0
    %1502 = vmatpush1.bf16.msra.mxu0 %v1474
    %1503 = vmatprep.subr.bf16.mxu0 0
    %1504 = vmatpush1.bf16.msra.mxu0 %v1473
    %1505 = vmatprep.subr.bf16.mxu0 0
    %1506 = vmatpush2.bf16.msra.mxu0 0
    %1507 = vmatprep.subr.bf16.mxu0 0
    %1508 = vmatpush2.bf16.msra.mxu0 0
    %1509 = vmatprep.subr.bf16.mxu0 0
    %1510 = vmatpush2.bf16.msra.mxu0 0
    %1511 = vmatprep.subr.bf16.mxu0 0
    %1512 = vmatpush2.bf16.msra.mxu0 0
    %1513 = vmatprep.subr.bf16.mxu0 0
    %1514 = vmatpush2.bf16.msra.mxu0 0
    %1515 = vmatprep.subr.bf16.mxu0 0
    %1516 = vmatpush2.bf16.msra.mxu0 0
    %1517 = vmatprep.subr.bf16.mxu0 0
    %1518 = vmatpush2.bf16.msra.mxu0 0
    %1519 = vmatprep.subr.bf16.mxu0 0
    %1520 = vmatpush2.bf16.msra.mxu0 0
    %1521 = vmatprep.mubr.bf16.mxu0 0
    %1522 = vmatmul.mubr.bf16.gmra.mxu0 %v1414
    %v1523 = vpop.f32.mrf.mxu0
    %v1524 = vadd.f32 %v1439, %v1523
    %v1525 = vpop.f32.mrf.mxu0
    %v1526 = vpop.f32.mrf.mxu0
    %v1527 = vadd.f32 %v1439, %v1526
    %v1528 = vpop.f32.mrf.mxu0
    %1529 = vmatprep.mubr.bf16.mxu0 0
    %1530 = vmatmul.mubr.bf16.gmra.mxu0 %v1415
    %v1531 = vpop.f32.mrf.mxu0
    %v1532 = vadd.f32 %v1439, %v1531
    %v1533 = vpop.f32.mrf.mxu0
    %v1534 = vpop.f32.mrf.mxu0
    %v1535 = vadd.f32 %v1439, %v1534
    %v1536 = vpop.f32.mrf.mxu0
    %1537 = vmatprep.mubr.bf16.mxu0 0
    %1538 = vmatmul.mubr.bf16.gmra.mxu0 %v1416
    %v1539 = vpop.f32.mrf.mxu0
    %v1540 = vadd.f32 %v1439, %v1539
    %v1541 = vpop.f32.mrf.mxu0
    %v1542 = vpop.f32.mrf.mxu0
    %v1543 = vadd.f32 %v1439, %v1542
    %v1544 = vpop.f32.mrf.mxu0
    %1545 = vmatprep.mubr.bf16.mxu0 0
    %1546 = vmatmul.mubr.bf16.gmra.mxu0 %v1417
    %v1547 = vpop.f32.mrf.mxu0
    %v1548 = vadd.f32 %v1439, %v1547
    %v1549 = vpop.f32.mrf.mxu0
    %v1550 = vpop.f32.mrf.mxu0
    %v1551 = vadd.f32 %v1439, %v1550
    %v1552 = vpop.f32.mrf.mxu0
    %1553 = vdwg.mxu0
    %1554 = vst [vmem:[#allocation4] sm:$0xff] %v1524
    %1555 = vst [vmem:[#allocation4 + $0x8] sm:$0xff] %v1527
    %1556 = vst [vmem:[#allocation4 + $0x10] sm:$0xff] %v1532
    %1557 = vst [vmem:[#allocation4 + $0x18] sm:$0xff] %v1535
    %1558 = vst [vmem:[#allocation4 + $0x20] sm:$0xff] %v1540
    %1559 = vst [vmem:[#allocation4 + $0x28] sm:$0xff] %v1543
    %1560 = vst [vmem:[#allocation4 + $0x30] sm:$0xff] %v1548
    %1561 = vst [vmem:[#allocation4 + $0x38] sm:$0xff] %v1551
    // Predicated region
    $region58: #{rnn_forward_sequence.1} parent=1 // pred_check
      _
    $region59: #{rnn_forward_sequence.1} parent=1 // pred_check_branch
      %1563 = sbr.rel (0) target = $region61
    $region60: #{rnn_forward_sequence.1} parent=1 // pred_region
      %s1565 = ssub.s32 1024, 1024
      %1566 = vsyncadd [#allocation5], %s1565
      %s1567 = sshll.u32 [#allocation4], 4
      %s1568 = int_to_ptr.vmem [resolvable:$true] %s1567
      %1573 = dma.vmem_to_hbm [thread:$0]  %s1568, 1024, %s13, [#allocation5], 128, 128, 8
    $region61: #{rnn_forward_sequence.1} parent=1 // pred_fallthru
      _
    // Predicated region
    $region62: #{rnn_forward_sequence.1} parent=1 // pred_check
      _
    $region63: #{rnn_forward_sequence.1} parent=1 // pred_check_branch
      %1575 = sbr.rel (0) target = $region65
    $region64: #{rnn_forward_sequence.1} parent=1 // pred_region
      %s1577 = ssub.s32 128, 128
      %1578 = vsyncadd [#allocation7], %s1577
      %s1580 = sshll.u32 [#allocation6], 4
      %s1581 = int_to_ptr.vmem [resolvable:$true] %s1580
      %1583 = dma.vmem_to_hbm [thread:$0]  %s1581, 128, %s14, [#allocation7]
    $region65: #{rnn_forward_sequence.1} parent=1 // pred_fallthru
      _
    // Predicated region
    $region66: #{rnn_forward_sequence.1} parent=1 // pred_check
      _
    $region67: #{rnn_forward_sequence.1} parent=1 // pred_check_branch
      %1585 = sbr.rel (0) target = $region69
    $region68: #{rnn_forward_sequence.1} parent=1 // pred_region
      %1586 = dma.done [#allocation5], 1024
    $region69: #{rnn_forward_sequence.1} parent=1 // pred_fallthru
      _
    // Predicated region
    $region70: #{rnn_forward_sequence.1} parent=1 // pred_check
      _
    $region71: #{rnn_forward_sequence.1} parent=1 // pred_check_branch
      %1588 = sbr.rel (0) target = $region73
    $region72: #{rnn_forward_sequence.1} parent=1 // pred_region
      %1589 = dma.done [#allocation7], 128
    $region73: #{rnn_forward_sequence.1} parent=1 // pred_fallthru
      _
    %1590 = vsyncpa [#allocation5], 1
    %1591 = vsyncpa [#allocation7], 1

</llo_original>
